<compile_context>
chip_gen: v5e
topology: v5e:2x2
jax: 0.10.0
libtpu: 0.0.40
codegen_flags: <defaults>
</compile_context>

<pallas_src>
import jax
import jax.numpy as jnp
from jax.experimental import pallas as pl
from jax.experimental.pallas import tpu as pltpu

EPS_BN = 1e-5
EPS_NORM = 1e-12
K_PAD = 32  # 9 taps * 3 input channels = 27, padded to a 32-wide K


def _make_supcon_kernel(B, H, W, cout, dim, tile_b):
    rows_tile = tile_b * H * W
    inv_total_rows = 1.0 / float(B * H * W)
    inv_hw = 1.0 / float(H * W)

    def kernel(p_ref, wc_ref, g2d_ref, b2d_ref, w1_ref, g1d_ref, b1d_ref,
               w2_ref, bias2_ref, out_ref,
               sum_ref, sq_ref, scale_ref, shift_ref, pooled_ref):
        phase = pl.program_id(0)        # 0: bn1 statistics, 1: apply + head
        t = pl.program_id(1)            # batch tile index
        n_tiles = pl.num_programs(1)

        # ---- encoder.conv1 (3x3 / s1 / p1, no bias) as one K=32 matmul ----
        # Operands stay bf16; the MXU accumulates in f32.
        feat = jnp.dot(p_ref[...], wc_ref[...],
                       preferred_element_type=jnp.float32)       # (rows_tile, cout)

        # ---- phase 0: one-pass bn1 statistics (sum, sum of squares) ----
        @pl.when((phase == 0) & (t == 0))
        def _init_stats():
            sum_ref[...] = jnp.zeros_like(sum_ref)
            sq_ref[...] = jnp.zeros_like(sq_ref)

        @pl.when(phase == 0)
        def _accum_stats():
            sum_ref[...] += jnp.sum(feat, axis=0, keepdims=True)
            sq_ref[...] += jnp.sum(feat * feat, axis=0, keepdims=True)

        # ---- phase 1, first tile: finalize bn1 scale/shift, zero pool accum ----
        @pl.when((phase == 1) & (t == 0))
        def _finalize_bn():
            mean = sum_ref[...] * inv_total_rows
            var = jnp.maximum(sq_ref[...] * inv_total_rows - mean * mean, 0.0)
            inv_std = jax.lax.rsqrt(var + EPS_BN)
            g = g2d_ref[...]
            scale_ref[...] = g * inv_std
            shift_ref[...] = b2d_ref[...] - g * mean * inv_std
            pooled_ref[...] = jnp.zeros_like(pooled_ref)

        # ---- phase 1: bn1 + ReLU + global average pool (vectorized) ----
        @pl.when(phase == 1)
        def _bn_relu_pool():
            y = jnp.maximum(feat * scale_ref[...] + shift_ref[...], 0.0)
            rows = jnp.sum(y.reshape(tile_b, H * W, cout), axis=1) * inv_hw
            start = pl.multiple_of(t * tile_b, tile_b)
            pooled_ref[pl.ds(start, tile_b), :] = rows            # (tile_b, cout)

        # ---- phase 1, last tile: projector + L2 normalize ----
        @pl.when((phase == 1) & (t == n_tiles - 1))
        def _projector():
            pooled = pooled_ref[...]                              # (B, cout) f32
            # Linear(in_dim, in_dim, bias=False)
            h = jnp.dot(pooled, w1_ref[...],
                        preferred_element_type=jnp.float32)
            # BatchNorm1d (training-mode batch stats) + ReLU
            m1 = jnp.mean(h, axis=0, keepdims=True)
            v1 = jnp.maximum(jnp.mean(h * h, axis=0, keepdims=True) - m1 * m1, 0.0)
            hn = (h - m1) * jax.lax.rsqrt(v1 + EPS_BN)
            hn = jnp.maximum(hn * g1d_ref[...] + b1d_ref[...], 0.0)
            # Linear(in_dim, dim)
            z = jnp.dot(hn, w2_ref[...],
                        preferred_element_type=jnp.float32) + bias2_ref[...]
            # F.normalize(z, p=2, dim=1): 1/max(||z||, eps) via rsqrt (EUP slot)
            ssq = jnp.sum(z * z, axis=1, keepdims=True)
            inv_norm = jax.lax.rsqrt(jnp.maximum(ssq, EPS_NORM * EPS_NORM))
            out_ref[...] = (z * inv_norm).astype(out_ref.dtype)

    return kernel


def _im2col_patches(x_nchw):
    """NCHW f32 -> (B*H*W, K_PAD) bf16 patch matrix (lane-aligned im2col)."""
    B, Cin, H, W = x_nchw.shape
    x = jnp.transpose(x_nchw, (0, 2, 3, 1))                       # (B, H, W, Cin)
    x_pad = jnp.pad(x, ((0, 0), (1, 1), (1, 1), (0, 0)))
    cols = []
    for kh in range(3):
        for kw in range(3):
            cols.append(x_pad[:, kh:kh + H, kw:kw + W, :])        # (B, H, W, Cin)
    patches = jnp.concatenate(cols, axis=-1)                      # (B, H, W, 9*Cin)
    k = 9 * Cin
    patches = jnp.pad(patches, ((0, 0), (0, 0), (0, 0), (0, K_PAD - k)))
    return patches.reshape(B * H * W, K_PAD).astype(jnp.bfloat16)


def _pack_conv_weight(wc):
    """OIHW (cout, cin, 3, 3) -> (K_PAD, cout) bf16, tap order (kh, kw, cin)."""
    cout, cin = wc.shape[0], wc.shape[1]
    w = jnp.transpose(wc, (2, 3, 1, 0)).reshape(9 * cin, cout)
    w = jnp.pad(w, ((0, K_PAD - 9 * cin), (0, 0)))
    return w.astype(jnp.bfloat16)


def supcon_forward(x_nchw, params, tile_b=8):
    """x_nchw: (B, 3, H, W) float32.  Returns L2-normalized embeddings (B, dim)."""
    B, Cin, H, W = x_nchw.shape
    wc, g2d, b2d, w1, g1d, b1d, w2, b2 = params
    cout = wc.shape[0]
    dim = w2.shape[0]
    tile_b = min(tile_b, B)
    assert B % tile_b == 0
    assert 9 * Cin <= K_PAD
    n_tiles = B // tile_b
    rows_tile = tile_b * H * W

    patches = _im2col_patches(x_nchw)                 # (B*H*W, K_PAD) bf16
    wc_packed = _pack_conv_weight(wc)                 # (K_PAD, cout) bf16

    kernel = _make_supcon_kernel(B, H, W, cout, dim, tile_b)

    grid_spec = pltpu.PrefetchScalarGridSpec(
        num_scalar_prefetch=0,
        grid=(2, n_tiles),                            # (phase, batch tile)
        in_specs=[
            pl.BlockSpec((rows_tile, K_PAD), lambda p, t: (t, 0)),  # patches tile
            pl.BlockSpec((K_PAD, cout), lambda p, t: (0, 0)),       # packed conv W
            pl.BlockSpec((1, cout), lambda p, t: (0, 0)),           # bn1 gamma
            pl.BlockSpec((1, cout), lambda p, t: (0, 0)),           # bn1 beta
            pl.BlockSpec((cout, cout), lambda p, t: (0, 0)),        # projector W1
            pl.BlockSpec((1, cout), lambda p, t: (0, 0)),           # bn1d gamma
            pl.BlockSpec((1, cout), lambda p, t: (0, 0)),           # bn1d beta
            pl.BlockSpec((cout, dim), lambda p, t: (0, 0)),         # projector W2
            pl.BlockSpec((1, dim), lambda p, t: (0, 0)),            # projector b2
        ],
        out_specs=pl.BlockSpec((B, dim), lambda p, t: (0, 0)),
        scratch_shapes=[
            pltpu.VMEM((1, cout), jnp.float32),   # sum(feat)
            pltpu.VMEM((1, cout), jnp.float32),   # sum(feat^2)
            pltpu.VMEM((1, cout), jnp.float32),   # bn1 fused scale
            pltpu.VMEM((1, cout), jnp.float32),   # bn1 fused shift
            pltpu.VMEM((B, cout), jnp.float32),   # pooled features (B, 64)
        ],
    )

    return pl.pallas_call(
        kernel,
        out_shape=jax.ShapeDtypeStruct((B, dim), jnp.float32),
        grid_spec=grid_spec,
        compiler_params=pltpu.CompilerParams(
            # Both axes "arbitrary": BN stats and pooled features are carried
            # in VMEM scratch across tiles, so the tile axis cannot be split
            # across cores without a cross-core reduction (TODO above).
            dimension_semantics=("arbitrary", "arbitrary"),
            # 48 MiB: plenty for double-buffered bf16 patch tiles + f32 feat,
            # and below the 64 MiB physical VMEM of a v7x TensorCore.
            vmem_limit_bytes=48 * 1024 * 1024,
        ),
    )(patches, wc_packed,
      g2d.reshape(1, cout), b2d.reshape(1, cout),
      w1.T, g1d.reshape(1, cout), b1d.reshape(1, cout),
      w2.T, b2.reshape(1, dim))


def supcon_reference(x_nchw, params):
    """Pure-JAX reference with the same math (inputs/conv weights rounded to bf16
    exactly like the kernel path)."""
    B, Cin, H, W = x_nchw.shape
    wc, g2d, b2d, w1, g1d, b1d, w2, b2 = params
    cout = wc.shape[0]
    patches = _im2col_patches(x_nchw).astype(jnp.float32)          # bf16-rounded
    wc_packed = _pack_conv_weight(wc).astype(jnp.float32)          # bf16-rounded
    feat = patches @ wc_packed                                     # (B*H*W, cout)
    mean = jnp.mean(feat, axis=0, keepdims=True)
    var = jnp.mean((feat - mean) ** 2, axis=0, keepdims=True)
    feat = jnp.maximum((feat - mean) * jax.lax.rsqrt(var + EPS_BN) * g2d + b2d, 0.0)
    pooled = jnp.mean(feat.reshape(B, H * W, cout), axis=1)
    h = pooled @ w1.T
    m1 = jnp.mean(h, axis=0, keepdims=True)
    v1 = jnp.mean((h - m1) ** 2, axis=0, keepdims=True)
    h = jnp.maximum((h - m1) * jax.lax.rsqrt(v1 + EPS_BN) * g1d + b1d, 0.0)
    z = h @ w2.T + b2
    norm = jnp.maximum(jnp.linalg.norm(z, axis=1, keepdims=True), EPS_NORM)
    return z / norm


def init_params(key, in_dim=64, dim=128, cin=3):
    """Deterministic synthetic parameter init (shapes match the module ctor)."""
    k_conv, k_w1, k_w2, k_b2 = jax.random.split(key, 4)
    # conv1: kaiming_normal_, mode='fan_out', nonlinearity='relu'
    fan_out = in_dim * 3 * 3
    wc = jax.random.normal(k_conv, (in_dim, cin, 3, 3), jnp.float32) * jnp.sqrt(2.0 / fan_out)
    # bn1 / BatchNorm1d affine params
    g2d = jnp.ones((in_dim,), jnp.float32)
    b2d = jnp.zeros((in_dim,), jnp.float32)
    g1d = jnp.ones((in_dim,), jnp.float32)
    b1d = jnp.zeros((in_dim,), jnp.float32)
    # projector Linear(in_dim, in_dim, bias=False): default U(-1/sqrt(in), 1/sqrt(in))
    bound1 = 1.0 / jnp.sqrt(in_dim)
    w1 = jax.random.uniform(k_w1, (in_dim, in_dim), jnp.float32, -bound1, bound1)
    # projector Linear(in_dim, dim)
    w2 = jax.random.uniform(k_w2, (dim, in_dim), jnp.float32, -bound1, bound1)
    b2 = jax.random.uniform(k_b2, (dim,), jnp.float32, -bound1, bound1)
    return (wc, g2d, b2d, w1, g1d, b1d, w2, b2)


if __name__ == "__main__":
    key = jax.random.PRNGKey(0)
    k_x, k_p = jax.random.split(key)

    B, C, H, W = 4, 3, 16, 16
    x = jax.random.normal(k_x, (B, C, H, W), jnp.float32)
    params = init_params(k_p, in_dim=64, dim=128, cin=C)

    out = jax.block_until_ready(supcon_forward(x, params, tile_b=2))

    assert out.shape == (B, 128), out.shape
    # rows are unit-norm
    norms = jnp.linalg.norm(out, axis=1)
    assert bool(jnp.all(jnp.abs(norms - 1.0) < 1e-4)), norms
    # matches the pure-JAX reference
    ref = supcon_reference(x, params)
    assert bool(jnp.all(jnp.abs(out - ref) < 2e-3)), float(jnp.max(jnp.abs(out - ref)))

    print("KERNEL_OK")
</pallas_src>

<mosaic_0001>
module attributes {stable_mosaic.version = 11 : i64} {
  func.func @kernel(%arg0: i32, %arg1: i32, %arg2: memref<512x32xbf16, #tpu.memory_space<vmem>>, %arg3: memref<32x64xbf16, #tpu.memory_space<vmem>>, %arg4: memref<1x64xf32, #tpu.memory_space<vmem>>, %arg5: memref<1x64xf32, #tpu.memory_space<vmem>>, %arg6: memref<64x64xf32, #tpu.memory_space<vmem>>, %arg7: memref<1x64xf32, #tpu.memory_space<vmem>>, %arg8: memref<1x64xf32, #tpu.memory_space<vmem>>, %arg9: memref<64x128xf32, #tpu.memory_space<vmem>>, %arg10: memref<1x128xf32, #tpu.memory_space<vmem>>, %arg11: memref<4x128xf32, #tpu.memory_space<vmem>>, %arg12: memref<1x64xf32, #tpu.memory_space<vmem>>, %arg13: memref<1x64xf32, #tpu.memory_space<vmem>>, %arg14: memref<1x64xf32, #tpu.memory_space<vmem>>, %arg15: memref<1x64xf32, #tpu.memory_space<vmem>>, %arg16: memref<4x64xf32, #tpu.memory_space<vmem>>) attributes {dimension_semantics = [#tpu.dimension_semantics<arbitrary>, #tpu.dimension_semantics<arbitrary>], iteration_bounds = array<i64: 2, 2>, scalar_prefetch = 0 : i64, scratch_operands = 5 : i64, tpu.core_type = #tpu.core_type<tc>, window_params = [{transform_indices = @transform_0, window_bounds = array<i64: 512, 32>}, {pipeline_mode = #tpu.pipeline_mode<synchronous>, transform_indices = @transform_1, window_bounds = array<i64: 32, 64>}, {pipeline_mode = #tpu.pipeline_mode<synchronous>, transform_indices = @transform_2, window_bounds = array<i64: 1, 64>}, {pipeline_mode = #tpu.pipeline_mode<synchronous>, transform_indices = @transform_3, window_bounds = array<i64: 1, 64>}, {pipeline_mode = #tpu.pipeline_mode<synchronous>, transform_indices = @transform_4, window_bounds = array<i64: 64, 64>}, {pipeline_mode = #tpu.pipeline_mode<synchronous>, transform_indices = @transform_5, window_bounds = array<i64: 1, 64>}, {pipeline_mode = #tpu.pipeline_mode<synchronous>, transform_indices = @transform_6, window_bounds = array<i64: 1, 64>}, {pipeline_mode = #tpu.pipeline_mode<synchronous>, transform_indices = @transform_7, window_bounds = array<i64: 64, 128>}, {pipeline_mode = #tpu.pipeline_mode<synchronous>, transform_indices = @transform_8, window_bounds = array<i64: 1, 128>}, {pipeline_mode = #tpu.pipeline_mode<synchronous>, transform_indices = @transform_9, window_bounds = array<i64: 4, 128>}]} {
    %c0 = arith.constant 0 : index
    %c0_0 = arith.constant 0 : index
    %0 = vector.load %arg2[%c0, %c0_0] : memref<512x32xbf16, #tpu.memory_space<vmem>>, vector<512x32xbf16>
    %c0_1 = arith.constant 0 : index
    %c0_2 = arith.constant 0 : index
    %1 = vector.load %arg3[%c0_1, %c0_2] : memref<32x64xbf16, #tpu.memory_space<vmem>>, vector<32x64xbf16>
    %cst = arith.constant dense<0.000000e+00> : vector<512x64xf32>
    %2 = tpu.matmul %0, %1, %cst {dimension_numbers = #tpu.dot_dimension_numbers<[1], [0], [0], [1], [0, 0, 1, 1], [], []>} : vector<512x32xbf16>, vector<32x64xbf16>, vector<512x64xf32> -> vector<512x64xf32>
    %c0_i32 = arith.constant 0 : i32
    %3 = arith.cmpi eq, %arg0, %c0_i32 : i32
    %c0_i32_3 = arith.constant 0 : i32
    %4 = arith.cmpi eq, %arg1, %c0_i32_3 : i32
    %5 = arith.andi %3, %4 : i1
    %6 = arith.extui %5 : i1 to i32
    %c0_i32_4 = arith.constant 0 : i32
    %7 = arith.cmpi ne, %6, %c0_i32_4 : i32
    scf.if %7 {
      %cst_14 = arith.constant 0.000000e+00 : f32
      %24 = vector.broadcast %cst_14 : f32 to vector<1x64xf32>
      %c0_15 = arith.constant 0 : index
      %c0_16 = arith.constant 0 : index
      %25 = vector.load %arg12[%c0_15, %c0_16] : memref<1x64xf32, #tpu.memory_space<vmem>>, vector<1x64xf32>
      tpu.vector_store %arg12[%c0_15, %c0_16], %24 {strides = array<i32>} : memref<1x64xf32, #tpu.memory_space<vmem>>, vector<1x64xf32>,
      %cst_17 = arith.constant 0.000000e+00 : f32
      %26 = vector.broadcast %cst_17 : f32 to vector<1x64xf32>
      %c0_18 = arith.constant 0 : index
      %c0_19 = arith.constant 0 : index
      %27 = vector.load %arg13[%c0_18, %c0_19] : memref<1x64xf32, #tpu.memory_space<vmem>>, vector<1x64xf32>
      tpu.vector_store %arg13[%c0_18, %c0_19], %26 {strides = array<i32>} : memref<1x64xf32, #tpu.memory_space<vmem>>, vector<1x64xf32>,
    } else {
    }
    %c0_i32_5 = arith.constant 0 : i32
    %8 = arith.cmpi eq, %arg0, %c0_i32_5 : i32
    %9 = arith.extui %8 : i1 to i32
    %c0_i32_6 = arith.constant 0 : i32
    %10 = arith.cmpi ne, %9, %c0_i32_6 : i32
    scf.if %10 {
      %c0_14 = arith.constant 0 : index
      %c0_15 = arith.constant 0 : index
      %24 = vector.load %arg12[%c0_14, %c0_15] : memref<1x64xf32, #tpu.memory_space<vmem>>, vector<1x64xf32>
      %cst_16 = arith.constant dense<0.000000e+00> : vector<64xf32>
      %25 = vector.multi_reduction <add>, %2, %cst_16 [0] : vector<512x64xf32> to vector<64xf32>
      %26 = vector.shape_cast %25 : vector<64xf32> to vector<1x64xf32>
      %27 = arith.addf %24, %26 : vector<1x64xf32>
      %c0_17 = arith.constant 0 : index
      %c0_18 = arith.constant 0 : index
      %28 = vector.load %arg12[%c0_17, %c0_18] : memref<1x64xf32, #tpu.memory_space<vmem>>, vector<1x64xf32>
      tpu.vector_store %arg12[%c0_17, %c0_18], %27 {strides = array<i32>} : memref<1x64xf32, #tpu.memory_space<vmem>>, vector<1x64xf32>,
      %c0_19 = arith.constant 0 : index
      %c0_20 = arith.constant 0 : index
      %29 = vector.load %arg13[%c0_19, %c0_20] : memref<1x64xf32, #tpu.memory_space<vmem>>, vector<1x64xf32>
      %30 = arith.mulf %2, %2 : vector<512x64xf32>
      %cst_21 = arith.constant dense<0.000000e+00> : vector<64xf32>
      %31 = vector.multi_reduction <add>, %30, %cst_21 [0] : vector<512x64xf32> to vector<64xf32>
      %32 = vector.shape_cast %31 : vector<64xf32> to vector<1x64xf32>
      %33 = arith.addf %29, %32 : vector<1x64xf32>
      %c0_22 = arith.constant 0 : index
      %c0_23 = arith.constant 0 : index
      %34 = vector.load %arg13[%c0_22, %c0_23] : memref<1x64xf32, #tpu.memory_space<vmem>>, vector<1x64xf32>
      tpu.vector_store %arg13[%c0_22, %c0_23], %33 {strides = array<i32>} : memref<1x64xf32, #tpu.memory_space<vmem>>, vector<1x64xf32>,
    } else {
    }
    %c1_i32 = arith.constant 1 : i32
    %11 = arith.cmpi eq, %arg0, %c1_i32 : i32
    %c0_i32_7 = arith.constant 0 : i32
    %12 = arith.cmpi eq, %arg1, %c0_i32_7 : i32
    %13 = arith.andi %11, %12 : i1
    %14 = arith.extui %13 : i1 to i32
    %c0_i32_8 = arith.constant 0 : i32
    %15 = arith.cmpi ne, %14, %c0_i32_8 : i32
    scf.if %15 {
      %c0_14 = arith.constant 0 : index
      %c0_15 = arith.constant 0 : index
      %24 = vector.load %arg12[%c0_14, %c0_15] : memref<1x64xf32, #tpu.memory_space<vmem>>, vector<1x64xf32>
      %cst_16 = arith.constant 9.765625E-4 : f32
      %25 = vector.broadcast %cst_16 : f32 to vector<1x64xf32>
      %26 = arith.mulf %24, %25 : vector<1x64xf32>
      %c0_17 = arith.constant 0 : index
      %c0_18 = arith.constant 0 : index
      %27 = vector.load %arg13[%c0_17, %c0_18] : memref<1x64xf32, #tpu.memory_space<vmem>>, vector<1x64xf32>
      %cst_19 = arith.constant 9.765625E-4 : f32
      %28 = vector.broadcast %cst_19 : f32 to vector<1x64xf32>
      %29 = arith.mulf %27, %28 : vector<1x64xf32>
      %30 = arith.mulf %26, %26 : vector<1x64xf32>
      %31 = arith.subf %29, %30 : vector<1x64xf32>
      %cst_20 = arith.constant 0.000000e+00 : f32
      %32 = vector.broadcast %cst_20 : f32 to vector<1x64xf32>
      %33 = arith.maximumf %31, %32 : vector<1x64xf32>
      %cst_21 = arith.constant 9.99999974E-6 : f32
      %34 = vector.broadcast %cst_21 : f32 to vector<1x64xf32>
      %35 = arith.addf %33, %34 : vector<1x64xf32>
      %36 = math.rsqrt %35 : vector<1x64xf32>
      %c0_22 = arith.constant 0 : index
      %c0_23 = arith.constant 0 : index
      %37 = vector.load %arg4[%c0_22, %c0_23] : memref<1x64xf32, #tpu.memory_space<vmem>>, vector<1x64xf32>
      %38 = arith.mulf %37, %36 : vector<1x64xf32>
      %c0_24 = arith.constant 0 : index
      %c0_25 = arith.constant 0 : index
      %39 = vector.load %arg14[%c0_24, %c0_25] : memref<1x64xf32, #tpu.memory_space<vmem>>, vector<1x64xf32>
      tpu.vector_store %arg14[%c0_24, %c0_25], %38 {strides = array<i32>} : memref<1x64xf32, #tpu.memory_space<vmem>>, vector<1x64xf32>,
      %c0_26 = arith.constant 0 : index
      %c0_27 = arith.constant 0 : index
      %40 = vector.load %arg5[%c0_26, %c0_27] : memref<1x64xf32, #tpu.memory_space<vmem>>, vector<1x64xf32>
      %41 = arith.mulf %37, %26 : vector<1x64xf32>
      %42 = arith.mulf %41, %36 : vector<1x64xf32>
      %43 = arith.subf %40, %42 : vector<1x64xf32>
      %c0_28 = arith.constant 0 : index
      %c0_29 = arith.constant 0 : index
      %44 = vector.load %arg15[%c0_28, %c0_29] : memref<1x64xf32, #tpu.memory_space<vmem>>, vector<1x64xf32>
      tpu.vector_store %arg15[%c0_28, %c0_29], %43 {strides = array<i32>} : memref<1x64xf32, #tpu.memory_space<vmem>>, vector<1x64xf32>,
      %cst_30 = arith.constant 0.000000e+00 : f32
      %45 = vector.broadcast %cst_30 : f32 to vector<4x64xf32>
      %c0_31 = arith.constant 0 : index
      %c0_32 = arith.constant 0 : index
      %46 = vector.load %arg16[%c0_31, %c0_32] : memref<4x64xf32, #tpu.memory_space<vmem>>, vector<4x64xf32>
      tpu.vector_store %arg16[%c0_31, %c0_32], %45 {strides = array<i32>} : memref<4x64xf32, #tpu.memory_space<vmem>>, vector<4x64xf32>,
    } else {
    }
    %c1_i32_9 = arith.constant 1 : i32
    %16 = arith.cmpi eq, %arg0, %c1_i32_9 : i32
    %17 = arith.extui %16 : i1 to i32
    %c0_i32_10 = arith.constant 0 : i32
    %18 = arith.cmpi ne, %17, %c0_i32_10 : i32
    scf.if %18 {
      %c0_14 = arith.constant 0 : index
      %c0_15 = arith.constant 0 : index
      %24 = vector.load %arg14[%c0_14, %c0_15] : memref<1x64xf32, #tpu.memory_space<vmem>>, vector<1x64xf32>
      %25 = vector.broadcast %24 : vector<1x64xf32> to vector<512x64xf32>
      %26 = arith.mulf %2, %25 : vector<512x64xf32>
      %c0_16 = arith.constant 0 : index
      %c0_17 = arith.constant 0 : index
      %27 = vector.load %arg15[%c0_16, %c0_17] : memref<1x64xf32, #tpu.memory_space<vmem>>, vector<1x64xf32>
      %28 = vector.broadcast %27 : vector<1x64xf32> to vector<512x64xf32>
      %29 = arith.addf %26, %28 : vector<512x64xf32>
      %cst_18 = arith.constant 0.000000e+00 : f32
      %30 = vector.broadcast %cst_18 : f32 to vector<512x64xf32>
      %31 = arith.maximumf %29, %30 : vector<512x64xf32>
      %32 = vector.shape_cast %31 : vector<512x64xf32> to vector<2x256x64xf32>
      %cst_19 = arith.constant dense<0.000000e+00> : vector<2x64xf32>
      %33 = vector.multi_reduction <add>, %32, %cst_19 [1] : vector<2x256x64xf32> to vector<2x64xf32>
      %cst_20 = arith.constant 3.906250e-03 : f32
      %34 = vector.broadcast %cst_20 : f32 to vector<2x64xf32>
      %35 = arith.mulf %33, %34 : vector<2x64xf32>
      %c2_i32 = arith.constant 2 : i32
      %36 = arith.muli %arg1, %c2_i32 : i32
      %37 = tpu.assume_multiple %36, 2 : i32
      %38 = arith.index_cast %37 : i32 to index
      %c0_21 = arith.constant 0 : index
      %39 = vector.load %arg16[%38, %c0_21] : memref<4x64xf32, #tpu.memory_space<vmem>>, vector<2x64xf32>
      tpu.vector_store %arg16[%38, %c0_21], %35 {strides = array<i32>} : memref<4x64xf32, #tpu.memory_space<vmem>>, vector<2x64xf32>,
    } else {
    }
    %c1_i32_11 = arith.constant 1 : i32
    %19 = arith.cmpi eq, %arg0, %c1_i32_11 : i32
    %c1_i32_12 = arith.constant 1 : i32
    %20 = arith.cmpi eq, %arg1, %c1_i32_12 : i32
    %21 = arith.andi %19, %20 : i1
    %22 = arith.extui %21 : i1 to i32
    %c0_i32_13 = arith.constant 0 : i32
    %23 = arith.cmpi ne, %22, %c0_i32_13 : i32
    scf.if %23 {
      %c0_14 = arith.constant 0 : index
      %c0_15 = arith.constant 0 : index
      %24 = vector.load %arg16[%c0_14, %c0_15] : memref<4x64xf32, #tpu.memory_space<vmem>>, vector<4x64xf32>
      %c0_16 = arith.constant 0 : index
      %c0_17 = arith.constant 0 : index
      %25 = vector.load %arg6[%c0_16, %c0_17] : memref<64x64xf32, #tpu.memory_space<vmem>>, vector<64x64xf32>
      %cst_18 = arith.constant dense<0.000000e+00> : vector<4x64xf32>
      %26 = tpu.matmul %24, %25, %cst_18 {dimension_numbers = #tpu.dot_dimension_numbers<[1], [0], [0], [1], [0, 0, 1, 1], [], []>} : vector<4x64xf32>, vector<64x64xf32>, vector<4x64xf32> -> vector<4x64xf32>
      %cst_19 = arith.constant dense<0.000000e+00> : vector<64xf32>
      %27 = vector.multi_reduction <add>, %26, %cst_19 [0] : vector<4x64xf32> to vector<64xf32>
      %28 = vector.shape_cast %27 : vector<64xf32> to vector<1x64xf32>
      %cst_20 = arith.constant 4.000000e+00 : f32
      %29 = vector.broadcast %cst_20 : f32 to vector<1x64xf32>
      %30 = arith.divf %28, %29 : vector<1x64xf32>
      %31 = arith.mulf %26, %26 : vector<4x64xf32>
      %cst_21 = arith.constant dense<0.000000e+00> : vector<64xf32>
      %32 = vector.multi_reduction <add>, %31, %cst_21 [0] : vector<4x64xf32> to vector<64xf32>
      %33 = vector.shape_cast %32 : vector<64xf32> to vector<1x64xf32>
      %cst_22 = arith.constant 4.000000e+00 : f32
      %34 = vector.broadcast %cst_22 : f32 to vector<1x64xf32>
      %35 = arith.divf %33, %34 : vector<1x64xf32>
      %36 = arith.mulf %30, %30 : vector<1x64xf32>
      %37 = arith.subf %35, %36 : vector<1x64xf32>
      %cst_23 = arith.constant 0.000000e+00 : f32
      %38 = vector.broadcast %cst_23 : f32 to vector<1x64xf32>
      %39 = arith.maximumf %37, %38 : vector<1x64xf32>
      %40 = vector.broadcast %30 : vector<1x64xf32> to vector<4x64xf32>
      %41 = arith.subf %26, %40 : vector<4x64xf32>
      %cst_24 = arith.constant 9.99999974E-6 : f32
      %42 = vector.broadcast %cst_24 : f32 to vector<1x64xf32>
      %43 = arith.addf %39, %42 : vector<1x64xf32>
      %44 = math.rsqrt %43 : vector<1x64xf32>
      %45 = vector.broadcast %44 : vector<1x64xf32> to vector<4x64xf32>
      %46 = arith.mulf %41, %45 : vector<4x64xf32>
      %c0_25 = arith.constant 0 : index
      %c0_26 = arith.constant 0 : index
      %47 = vector.load %arg7[%c0_25, %c0_26] : memref<1x64xf32, #tpu.memory_space<vmem>>, vector<1x64xf32>
      %48 = vector.broadcast %47 : vector<1x64xf32> to vector<4x64xf32>
      %49 = arith.mulf %46, %48 : vector<4x64xf32>
      %c0_27 = arith.constant 0 : index
      %c0_28 = arith.constant 0 : index
      %50 = vector.load %arg8[%c0_27, %c0_28] : memref<1x64xf32, #tpu.memory_space<vmem>>, vector<1x64xf32>
      %51 = vector.broadcast %50 : vector<1x64xf32> to vector<4x64xf32>
      %52 = arith.addf %49, %51 : vector<4x64xf32>
      %cst_29 = arith.constant 0.000000e+00 : f32
      %53 = vector.broadcast %cst_29 : f32 to vector<4x64xf32>
      %54 = arith.maximumf %52, %53 : vector<4x64xf32>
      %c0_30 = arith.constant 0 : index
      %c0_31 = arith.constant 0 : index
      %55 = vector.load %arg9[%c0_30, %c0_31] : memref<64x128xf32, #tpu.memory_space<vmem>>, vector<64x128xf32>
      %cst_32 = arith.constant dense<0.000000e+00> : vector<4x128xf32>
      %56 = tpu.matmul %54, %55, %cst_32 {dimension_numbers = #tpu.dot_dimension_numbers<[1], [0], [0], [1], [0, 0, 1, 1], [], []>} : vector<4x64xf32>, vector<64x128xf32>, vector<4x128xf32> -> vector<4x128xf32>
      %c0_33 = arith.constant 0 : index
      %c0_34 = arith.constant 0 : index
      %57 = vector.load %arg10[%c0_33, %c0_34] : memref<1x128xf32, #tpu.memory_space<vmem>>, vector<1x128xf32>
      %58 = vector.broadcast %57 : vector<1x128xf32> to vector<4x128xf32>
      %59 = arith.addf %56, %58 : vector<4x128xf32>
      %60 = arith.mulf %59, %59 : vector<4x128xf32>
      %cst_35 = arith.constant dense<0.000000e+00> : vector<4xf32>
      %61 = vector.multi_reduction <add>, %60, %cst_35 [1] : vector<4x128xf32> to vector<4xf32>
      %62 = vector.shape_cast %61 : vector<4xf32> to vector<4x1xf32>
      %cst_36 = arith.constant 1.000000e-24 : f32
      %63 = vector.broadcast %cst_36 : f32 to vector<4x1xf32>
      %64 = arith.maximumf %62, %63 : vector<4x1xf32>
      %65 = math.rsqrt %64 : vector<4x1xf32>
      %66 = vector.broadcast %65 : vector<4x1xf32> to vector<4x128xf32>
      %67 = arith.mulf %59, %66 : vector<4x128xf32>
      %c0_37 = arith.constant 0 : index
      %c0_38 = arith.constant 0 : index
      %68 = vector.load %arg11[%c0_37, %c0_38] : memref<4x128xf32, #tpu.memory_space<vmem>>, vector<4x128xf32>
      tpu.vector_store %arg11[%c0_37, %c0_38], %67 {strides = array<i32>} : memref<4x128xf32, #tpu.memory_space<vmem>>, vector<4x128xf32>,
    } else {
    }
    return
  }
  func.func @transform_0(%arg0: i32, %arg1: i32) -> (i32, i32) {
    %c0_i32 = arith.constant 0 : i32
    %c0_i32_0 = arith.constant 0 : i32
    return %arg1, %c0_i32 : i32, i32
  }
  func.func @transform_1(%arg0: i32, %arg1: i32) -> (i32, i32) {
    %c0_i32 = arith.constant 0 : i32
    %c0_i32_0 = arith.constant 0 : i32
    %c0_i32_1 = arith.constant 0 : i32
    return %c0_i32, %c0_i32_0 : i32, i32
  }
  func.func @transform_2(%arg0: i32, %arg1: i32) -> (i32, i32) {
    %c0_i32 = arith.constant 0 : i32
    %c0_i32_0 = arith.constant 0 : i32
    %c0_i32_1 = arith.constant 0 : i32
    return %c0_i32, %c0_i32_0 : i32, i32
  }
  func.func @transform_3(%arg0: i32, %arg1: i32) -> (i32, i32) {
    %c0_i32 = arith.constant 0 : i32
    %c0_i32_0 = arith.constant 0 : i32
    %c0_i32_1 = arith.constant 0 : i32
    return %c0_i32, %c0_i32_0 : i32, i32
  }
  func.func @transform_4(%arg0: i32, %arg1: i32) -> (i32, i32) {
    %c0_i32 = arith.constant 0 : i32
    %c0_i32_0 = arith.constant 0 : i32
    %c0_i32_1 = arith.constant 0 : i32
    return %c0_i32, %c0_i32_0 : i32, i32
  }
  func.func @transform_5(%arg0: i32, %arg1: i32) -> (i32, i32) {
    %c0_i32 = arith.constant 0 : i32
    %c0_i32_0 = arith.constant 0 : i32
    %c0_i32_1 = arith.constant 0 : i32
    return %c0_i32, %c0_i32_0 : i32, i32
  }
  func.func @transform_6(%arg0: i32, %arg1: i32) -> (i32, i32) {
    %c0_i32 = arith.constant 0 : i32
    %c0_i32_0 = arith.constant 0 : i32
    %c0_i32_1 = arith.constant 0 : i32
    return %c0_i32, %c0_i32_0 : i32, i32
  }
  func.func @transform_7(%arg0: i32, %arg1: i32) -> (i32, i32) {
    %c0_i32 = arith.constant 0 : i32
    %c0_i32_0 = arith.constant 0 : i32
    %c0_i32_1 = arith.constant 0 : i32
    return %c0_i32, %c0_i32_0 : i32, i32
  }
  func.func @transform_8(%arg0: i32, %arg1: i32) -> (i32, i32) {
    %c0_i32 = arith.constant 0 : i32
    %c0_i32_0 = arith.constant 0 : i32
    %c0_i32_1 = arith.constant 0 : i32
    return %c0_i32, %c0_i32_0 : i32, i32
  }
  func.func @transform_9(%arg0: i32, %arg1: i32) -> (i32, i32) {
    %c0_i32 = arith.constant 0 : i32
    %c0_i32_0 = arith.constant 0 : i32
    %c0_i32_1 = arith.constant 0 : i32
    return %c0_i32, %c0_i32_0 : i32, i32
  }
}

</mosaic_0001>

<llo_original>
// kernel: tpu_custom_call.1
$region0: #{tpu_custom_call.1}
  #allocation0 [shape = 'u32[]', space=smem, size = 0x4, offset = 0x4, fixed_abs, tag = 'smem constant byte address 0x4 - core index']
  #allocation1 [shape = 'u32[72,128]{1,0:T(1,128)}', space=vmem, size = 0x9000, scoped, tag = 'internal scratch']
  #allocation2 [shape = 'f32[1,64]{1,0:T(1,128)}', space=vmem, size = 0x200, scoped, tag = 'scratch operand']
  #allocation3 [shape = 'f32[1,64]{1,0:T(1,128)}', space=vmem, size = 0x200, scoped, tag = 'scratch operand']
  #allocation4 [shape = 'f32[1,64]{1,0:T(1,128)}', space=vmem, size = 0x200, scoped, tag = 'scratch operand']
  #allocation5 [shape = 'f32[1,64]{1,0:T(1,128)}', space=vmem, size = 0x200, scoped, tag = 'scratch operand']
  #allocation6 [shape = 'f32[4,64]{1,0:T(4,128)}', space=vmem, size = 0x800, scoped, tag = 'scratch operand']
  %s0 = inlined_call_operand.vmem [shape: bf16[1024,32], index: 0, kind: input, shape index: {}]
  %s1 = inlined_call_operand.vmem [shape: bf16[32,64], index: 1, kind: input, shape index: {}]
  %s2 = inlined_call_operand.vmem [shape: f32[1,64], index: 2, kind: input, shape index: {}]
  %s3 = inlined_call_operand.vmem [shape: f32[1,64], index: 3, kind: input, shape index: {}]
  %s4 = inlined_call_operand.vmem [shape: f32[64,64], index: 4, kind: input, shape index: {}]
  %s5 = inlined_call_operand.vmem [shape: f32[1,64], index: 5, kind: input, shape index: {}]
  %s6 = inlined_call_operand.vmem [shape: f32[1,64], index: 6, kind: input, shape index: {}]
  %s7 = inlined_call_operand.vmem [shape: f32[64,128], index: 7, kind: input, shape index: {}]
  %s8 = inlined_call_operand.vmem [shape: f32[1,128], index: 8, kind: input, shape index: {}]
  %s9 = inlined_call_operand.hbm [shape: f32[4,128], index: 9, kind: output, shape index: {}]
  %s10 = sld [smem:[#allocation0]]
  $region89: #{tpu_custom_call.1} parent=0
    _
  %s12 = ssub.s32 1, %s10
  %s13 = scalar_select 0, %s12, %s10
  $region1: #{tpu_custom_call.1} parent=0
    #allocation7 [shape = 'u8[2048]{0}', space=vmem, size = 0x800, scoped, tag = 'output window, operand 0, single buffered']
    #allocation8 [shape = 's32[2]{0}', space=sflag, size = 0x8, scoped, tag = 'scoped memory for tpu_custom_call.1']
    %14 = vsyncpa [#allocation8], 0
    loop: start=0, step=1, limit=6
    $region2: #{tpu_custom_call.1} parent=1 // loop_pre_header
      _
    $region3: #{tpu_custom_call.1} parent=1 // loop_header
      %s16 = sphi 0, %s20
      %p17 = scmp.ge.s32.totalorder %s16, 6
      %s23 = sphi 0, %s35
      %s24 = sphi 0, %s31
      %s25 = sphi 0, %s23
      %s26 = sphi 0, %s24
      %s27 = sphi 0, %s25
      %s28 = sphi 0, %s26
      %s38 = sphi 0, %s40
      %s41 = sphi 0, %s38
      %s42 = sphi 0, %s41
      %s58 = sphi 0, %s42
      %s62 = sphi 0, %s62
      %s64 = sphi 0, %s62
      %s65 = sphi 0, %s64
      %s79 = sphi 0, %s65
      %s83 = sphi 0, %s83
      %s85 = sphi 0, %s83
      %s86 = sphi 0, %s85
      %s100 = sphi 0, %s86
      %s104 = sphi 0, %s104
      %s106 = sphi 0, %s104
      %s107 = sphi 0, %s106
      %s121 = sphi 0, %s107
      %s125 = sphi 0, %s125
      %s127 = sphi 0, %s125
      %s128 = sphi 0, %s127
      %s142 = sphi 0, %s128
      %s146 = sphi 0, %s146
      %s148 = sphi 0, %s146
      %s149 = sphi 0, %s148
      %s163 = sphi 0, %s149
      %s167 = sphi 0, %s167
      %s169 = sphi 0, %s167
      %s170 = sphi 0, %s169
      %s184 = sphi 0, %s170
      %s188 = sphi 0, %s188
      %s190 = sphi 0, %s188
      %s191 = sphi 0, %s190
      %s205 = sphi 0, %s191
      %s209 = sphi 0, %s209
      %s211 = sphi 0, %s209
      %s212 = sphi 0, %s211
      %s226 = sphi 0, %s212
      %s230 = sphi 0, %s230
      %s232 = sphi 0, %s230
      %s233 = sphi 0, %s232
      %s247 = sphi 0, %s233
    $region4: #{tpu_custom_call.1} parent=1 // loop_header_branch
      %19 = sbr.rel (%p17) target = $region8
    $region5: #{tpu_custom_call.1} parent=1 // loop_body
      %s21 = ssub.s32 %s16, 1
      %s22 = ssub.s32 %s16, 2
      %s29 = sadd.s32 1, %s24
      %p30 = scmp.ge.s32.totalorder %s29, 2
      %s31 = scalar_select %p30, 0, %s29
      %s32 = sadd.s32 1, %s23
      %s33 = scalar_select %p30, %s32, %s23
      %p34 = scmp.ge.s32.totalorder %s33, 2
      %s35 = scalar_select %p34, 0, %s33
      %s36 = ssub.s32 %s24, %s31
      %p37 = scmp.eq.s32.totalorder %s36, 0
      %s39 = sadd.s32 %s38, 1
      %s40 = scalar_select %p37, %s38, %s39
      %p43 = pneg %p37
      %p44 = scmp.eq.s32.totalorder %s16, 3
      %p45 = por %p43, %p44
      %p46 = scmp.ne.s32.totalorder %s38, %s41
      %p47 = scmp.eq.s32.totalorder %s16, 0
      %p48 = por %p46, %p47
      %p49 = scmp.ne.s32.totalorder %s38, %s41
      %p50 = scmp.eq.s32.totalorder %s21, 3
      %p51 = por %p49, %p50
      %p52 = scmp.ne.s32.totalorder %s41, %s42
      %p53 = scmp.eq.s32.totalorder %s21, 0
      %p54 = por %p52, %p53
      %p55 = scmp.ne.s32.totalorder %s41, %s42
      %p56 = scmp.eq.s32.totalorder %s22, 3
      %p57 = por %p55, %p56
      %p59 = scmp.ne.s32.totalorder %s42, %s58
      %p60 = scmp.eq.s32.totalorder %s22, 0
      %p61 = por %p59, %p60
      %s63 = sadd.s32 %s62, 1
      %p66 = scmp.eq.s32.totalorder %s16, 3
      %p67 = scmp.ne.s32.totalorder %s62, %s64
      %p68 = scmp.eq.s32.totalorder %s16, 0
      %p69 = por %p67, %p68
      %p70 = scmp.ne.s32.totalorder %s62, %s64
      %p71 = scmp.eq.s32.totalorder %s21, 3
      %p72 = por %p70, %p71
      %p73 = scmp.ne.s32.totalorder %s64, %s65
      %p74 = scmp.eq.s32.totalorder %s21, 0
      %p75 = por %p73, %p74
      %p76 = scmp.ne.s32.totalorder %s64, %s65
      %p77 = scmp.eq.s32.totalorder %s22, 3
      %p78 = por %p76, %p77
      %p80 = scmp.ne.s32.totalorder %s65, %s79
      %p81 = scmp.eq.s32.totalorder %s22, 0
      %p82 = por %p80, %p81
      %s84 = sadd.s32 %s83, 1
      %p87 = scmp.eq.s32.totalorder %s16, 3
      %p88 = scmp.ne.s32.totalorder %s83, %s85
      %p89 = scmp.eq.s32.totalorder %s16, 0
      %p90 = por %p88, %p89
      %p91 = scmp.ne.s32.totalorder %s83, %s85
      %p92 = scmp.eq.s32.totalorder %s21, 3
      %p93 = por %p91, %p92
      %p94 = scmp.ne.s32.totalorder %s85, %s86
      %p95 = scmp.eq.s32.totalorder %s21, 0
      %p96 = por %p94, %p95
      %p97 = scmp.ne.s32.totalorder %s85, %s86
      %p98 = scmp.eq.s32.totalorder %s22, 3
      %p99 = por %p97, %p98
      %p101 = scmp.ne.s32.totalorder %s86, %s100
      %p102 = scmp.eq.s32.totalorder %s22, 0
      %p103 = por %p101, %p102
      %s105 = sadd.s32 %s104, 1
      %p108 = scmp.eq.s32.totalorder %s16, 3
      %p109 = scmp.ne.s32.totalorder %s104, %s106
      %p110 = scmp.eq.s32.totalorder %s16, 0
      %p111 = por %p109, %p110
      %p112 = scmp.ne.s32.totalorder %s104, %s106
      %p113 = scmp.eq.s32.totalorder %s21, 3
      %p114 = por %p112, %p113
      %p115 = scmp.ne.s32.totalorder %s106, %s107
      %p116 = scmp.eq.s32.totalorder %s21, 0
      %p117 = por %p115, %p116
      %p118 = scmp.ne.s32.totalorder %s106, %s107
      %p119 = scmp.eq.s32.totalorder %s22, 3
      %p120 = por %p118, %p119
      %p122 = scmp.ne.s32.totalorder %s107, %s121
      %p123 = scmp.eq.s32.totalorder %s22, 0
      %p124 = por %p122, %p123
      %s126 = sadd.s32 %s125, 1
      %p129 = scmp.eq.s32.totalorder %s16, 3
      %p130 = scmp.ne.s32.totalorder %s125, %s127
      %p131 = scmp.eq.s32.totalorder %s16, 0
      %p132 = por %p130, %p131
      %p133 = scmp.ne.s32.totalorder %s125, %s127
      %p134 = scmp.eq.s32.totalorder %s21, 3
      %p135 = por %p133, %p134
      %p136 = scmp.ne.s32.totalorder %s127, %s128
      %p137 = scmp.eq.s32.totalorder %s21, 0
      %p138 = por %p136, %p137
      %p139 = scmp.ne.s32.totalorder %s127, %s128
      %p140 = scmp.eq.s32.totalorder %s22, 3
      %p141 = por %p139, %p140
      %p143 = scmp.ne.s32.totalorder %s128, %s142
      %p144 = scmp.eq.s32.totalorder %s22, 0
      %p145 = por %p143, %p144
      %s147 = sadd.s32 %s146, 1
      %p150 = scmp.eq.s32.totalorder %s16, 3
      %p151 = scmp.ne.s32.totalorder %s146, %s148
      %p152 = scmp.eq.s32.totalorder %s16, 0
      %p153 = por %p151, %p152
      %p154 = scmp.ne.s32.totalorder %s146, %s148
      %p155 = scmp.eq.s32.totalorder %s21, 3
      %p156 = por %p154, %p155
      %p157 = scmp.ne.s32.totalorder %s148, %s149
      %p158 = scmp.eq.s32.totalorder %s21, 0
      %p159 = por %p157, %p158
      %p160 = scmp.ne.s32.totalorder %s148, %s149
      %p161 = scmp.eq.s32.totalorder %s22, 3
      %p162 = por %p160, %p161
      %p164 = scmp.ne.s32.totalorder %s149, %s163
      %p165 = scmp.eq.s32.totalorder %s22, 0
      %p166 = por %p164, %p165
      %s168 = sadd.s32 %s167, 1
      %p171 = scmp.eq.s32.totalorder %s16, 3
      %p172 = scmp.ne.s32.totalorder %s167, %s169
      %p173 = scmp.eq.s32.totalorder %s16, 0
      %p174 = por %p172, %p173
      %p175 = scmp.ne.s32.totalorder %s167, %s169
      %p176 = scmp.eq.s32.totalorder %s21, 3
      %p177 = por %p175, %p176
      %p178 = scmp.ne.s32.totalorder %s169, %s170
      %p179 = scmp.eq.s32.totalorder %s21, 0
      %p180 = por %p178, %p179
      %p181 = scmp.ne.s32.totalorder %s169, %s170
      %p182 = scmp.eq.s32.totalorder %s22, 3
      %p183 = por %p181, %p182
      %p185 = scmp.ne.s32.totalorder %s170, %s184
      %p186 = scmp.eq.s32.totalorder %s22, 0
      %p187 = por %p185, %p186
      %s189 = sadd.s32 %s188, 1
      %p192 = scmp.eq.s32.totalorder %s16, 3
      %p193 = scmp.ne.s32.totalorder %s188, %s190
      %p194 = scmp.eq.s32.totalorder %s16, 0
      %p195 = por %p193, %p194
      %p196 = scmp.ne.s32.totalorder %s188, %s190
      %p197 = scmp.eq.s32.totalorder %s21, 3
      %p198 = por %p196, %p197
      %p199 = scmp.ne.s32.totalorder %s190, %s191
      %p200 = scmp.eq.s32.totalorder %s21, 0
      %p201 = por %p199, %p200
      %p202 = scmp.ne.s32.totalorder %s190, %s191
      %p203 = scmp.eq.s32.totalorder %s22, 3
      %p204 = por %p202, %p203
      %p206 = scmp.ne.s32.totalorder %s191, %s205
      %p207 = scmp.eq.s32.totalorder %s22, 0
      %p208 = por %p206, %p207
      %s210 = sadd.s32 %s209, 1
      %p213 = scmp.eq.s32.totalorder %s16, 3
      %p214 = scmp.ne.s32.totalorder %s209, %s211
      %p215 = scmp.eq.s32.totalorder %s16, 0
      %p216 = por %p214, %p215
      %p217 = scmp.ne.s32.totalorder %s209, %s211
      %p218 = scmp.eq.s32.totalorder %s21, 3
      %p219 = por %p217, %p218
      %p220 = scmp.ne.s32.totalorder %s211, %s212
      %p221 = scmp.eq.s32.totalorder %s21, 0
      %p222 = por %p220, %p221
      %p223 = scmp.ne.s32.totalorder %s211, %s212
      %p224 = scmp.eq.s32.totalorder %s22, 3
      %p225 = por %p223, %p224
      %p227 = scmp.ne.s32.totalorder %s212, %s226
      %p228 = scmp.eq.s32.totalorder %s22, 0
      %p229 = por %p227, %p228
      %s231 = sadd.s32 %s230, 1
      %p234 = scmp.eq.s32.totalorder %s16, 3
      %p235 = scmp.ne.s32.totalorder %s230, %s232
      %p236 = scmp.eq.s32.totalorder %s16, 0
      %p237 = por %p235, %p236
      %p238 = scmp.ne.s32.totalorder %s230, %s232
      %p239 = scmp.eq.s32.totalorder %s21, 3
      %p240 = por %p238, %p239
      %p241 = scmp.ne.s32.totalorder %s232, %s233
      %p242 = scmp.eq.s32.totalorder %s21, 0
      %p243 = por %p241, %p242
      %p244 = scmp.ne.s32.totalorder %s232, %s233
      %p245 = scmp.eq.s32.totalorder %s22, 3
      %p246 = por %p244, %p245
      %p248 = scmp.ne.s32.totalorder %s233, %s247
      %p249 = scmp.eq.s32.totalorder %s22, 0
      %p250 = por %p248, %p249
      %p251 = scmp.le.s32.totalorder 1, %s16
      %p252 = scmp.lt.s32.totalorder %s16, 5
      %p253 = pnand %p251, %p252
      %p254 = pneg %p253
      // Predicated region
      $region9: #{tpu_custom_call.1} parent=5 // pred_check
        _
      $region10: #{tpu_custom_call.1} parent=5 // pred_check_branch
        %256 = sbr.rel (%p253) target = $region12
      $region11: #{tpu_custom_call.1} parent=5 // pred_region
        %s257 = ssub.s32 %s16, 1
        // Predicated region
        $region13: #{tpu_custom_call.1} parent=11 // pred_check
          %p258 = pneg %p75
        $region14: #{tpu_custom_call.1} parent=11 // pred_check_branch
          %260 = sbr.rel (%p258) target = $region16
        $region15: #{tpu_custom_call.1} parent=11 // pred_region
          _
        $region16: #{tpu_custom_call.1} parent=11 // pred_fallthru
          _
        // Predicated region
        $region17: #{tpu_custom_call.1} parent=11 // pred_check
          %p261 = pneg %p96
        $region18: #{tpu_custom_call.1} parent=11 // pred_check_branch
          %263 = sbr.rel (%p261) target = $region20
        $region19: #{tpu_custom_call.1} parent=11 // pred_region
          _
        $region20: #{tpu_custom_call.1} parent=11 // pred_fallthru
          _
        // Predicated region
        $region21: #{tpu_custom_call.1} parent=11 // pred_check
          %p264 = pneg %p117
        $region22: #{tpu_custom_call.1} parent=11 // pred_check_branch
          %266 = sbr.rel (%p264) target = $region24
        $region23: #{tpu_custom_call.1} parent=11 // pred_region
          _
        $region24: #{tpu_custom_call.1} parent=11 // pred_fallthru
          _
        // Predicated region
        $region25: #{tpu_custom_call.1} parent=11 // pred_check
          %p267 = pneg %p138
        $region26: #{tpu_custom_call.1} parent=11 // pred_check_branch
          %269 = sbr.rel (%p267) target = $region28
        $region27: #{tpu_custom_call.1} parent=11 // pred_region
          _
        $region28: #{tpu_custom_call.1} parent=11 // pred_fallthru
          _
        // Predicated region
        $region29: #{tpu_custom_call.1} parent=11 // pred_check
          %p270 = pneg %p159
        $region30: #{tpu_custom_call.1} parent=11 // pred_check_branch
          %272 = sbr.rel (%p270) target = $region32
        $region31: #{tpu_custom_call.1} parent=11 // pred_region
          _
        $region32: #{tpu_custom_call.1} parent=11 // pred_fallthru
          _
        // Predicated region
        $region33: #{tpu_custom_call.1} parent=11 // pred_check
          %p273 = pneg %p180
        $region34: #{tpu_custom_call.1} parent=11 // pred_check_branch
          %275 = sbr.rel (%p273) target = $region36
        $region35: #{tpu_custom_call.1} parent=11 // pred_region
          _
        $region36: #{tpu_custom_call.1} parent=11 // pred_fallthru
          _
        // Predicated region
        $region37: #{tpu_custom_call.1} parent=11 // pred_check
          %p276 = pneg %p201
        $region38: #{tpu_custom_call.1} parent=11 // pred_check_branch
          %278 = sbr.rel (%p276) target = $region40
        $region39: #{tpu_custom_call.1} parent=11 // pred_region
          _
        $region40: #{tpu_custom_call.1} parent=11 // pred_fallthru
          _
        // Predicated region
        $region41: #{tpu_custom_call.1} parent=11 // pred_check
          %p279 = pneg %p222
        $region42: #{tpu_custom_call.1} parent=11 // pred_check_branch
          %281 = sbr.rel (%p279) target = $region44
        $region43: #{tpu_custom_call.1} parent=11 // pred_region
          _
        $region44: #{tpu_custom_call.1} parent=11 // pred_fallthru
          _
      $region12: #{tpu_custom_call.1} parent=5 // pred_fallthru
        _
      %p282 = scmp.lt.s32.totalorder %s16, 4
      // Predicated region
      $region45: #{tpu_custom_call.1} parent=5 // pred_check
        %p283 = pneg %p282
      $region46: #{tpu_custom_call.1} parent=5 // pred_check_branch
        %285 = sbr.rel (%p283) target = $region48
      $region47: #{tpu_custom_call.1} parent=5 // pred_region
        // Predicated region
        $region49: #{tpu_custom_call.1} parent=47 // pred_check
          %p286 = pneg %p48
        $region50: #{tpu_custom_call.1} parent=47 // pred_check_branch
          %288 = sbr.rel (%p286) target = $region52
        $region51: #{tpu_custom_call.1} parent=47 // pred_region
          %s289 = smul.u32 64, %s24
          %p290 = scmp.lt.s32.totalorder %s289, 127
          %s291 = scalar_select %p290, %s289, 127
          %s292 = smul.addr %s291, 4
          %s293 = scalar_lea.vmem %s0, %s292
          %s294 = smul.u32 64, %s24
        $region52: #{tpu_custom_call.1} parent=47 // pred_fallthru
          _
      $region48: #{tpu_custom_call.1} parent=5 // pred_fallthru
        _
      %p295 = scmp.le.s32.totalorder 1, %s16
      %p296 = scmp.lt.s32.totalorder %s16, 5
      %p297 = pnand %p295, %p296
      %p298 = pneg %p297
      // Predicated region
      $region53: #{tpu_custom_call.1} parent=5 // pred_check
        _
      $region54: #{tpu_custom_call.1} parent=5 // pred_check_branch
        %300 = sbr.rel (%p297) target = $region56
      $region55: #{tpu_custom_call.1} parent=5 // pred_region
        %s301 = ssub.s32 %s16, 1
        %s302 = smul.u32 64, %s26
        %p303 = scmp.lt.s32.totalorder %s302, 127
        %s304 = scalar_select %p303, %s302, 127
        %s305 = smul.addr %s304, 4
        %s306 = scalar_lea.vmem %s0, %s305
        %p307 = pneg %p54
        %p308 = pneg %p51
        %p309 = pneg %p75
        %p310 = pneg %p72
        %p311 = pneg %p96
        %p312 = pneg %p93
        %p313 = pneg %p117
        %p314 = pneg %p114
        %p315 = pneg %p138
        %p316 = pneg %p135
        %p317 = pneg %p159
        %p318 = pneg %p156
        %p319 = pneg %p180
        %p320 = pneg %p177
        %p321 = pneg %p201
        %p322 = pneg %p198
        %p323 = pneg %p222
        %p324 = pneg %p219
        %p325 = pneg %p243
        %p326 = pneg %p240
        %s327 = smul.u32 64, %s26
        %p328 = scmp.lt.s32.totalorder %s327, 127
        %s329 = scalar_select %p328, %s327, 127
        %s330 = smul.addr %s329, 4
        %s331 = scalar_lea.vmem %s0, %s330
        %s332 = smul.u32 64, %s26
        %v334 = vld [vmem:[%s331] sm:$0xf]
        %v335 = vld [vmem:[%s331 + $0x4] sm:$0xf]
        %v336 = vld [vmem:[%s331 + $0x8] sm:$0xf]
        %v337 = vld [vmem:[%s331 + $0xc] sm:$0xf]
        %v338 = vld [vmem:[%s331 + $0x10] sm:$0xf]
        %v339 = vld [vmem:[%s331 + $0x14] sm:$0xf]
        %v340 = vld [vmem:[%s331 + $0x18] sm:$0xf]
        %v341 = vld [vmem:[%s331 + $0x1c] sm:$0xf]
        %v342 = vld [vmem:[%s331 + $0x20] sm:$0xf]
        %v343 = vld [vmem:[%s331 + $0x24] sm:$0xf]
        %v344 = vld [vmem:[%s331 + $0x28] sm:$0xf]
        %v345 = vld [vmem:[%s331 + $0x2c] sm:$0xf]
        %v346 = vld [vmem:[%s331 + $0x30] sm:$0xf]
        %v347 = vld [vmem:[%s331 + $0x34] sm:$0xf]
        %v348 = vld [vmem:[%s331 + $0x38] sm:$0xf]
        %v349 = vld [vmem:[%s331 + $0x3c] sm:$0xf]
        %v350 = vld [vmem:[%s331 + $0x40] sm:$0xf]
        %v351 = vld [vmem:[%s331 + $0x44] sm:$0xf]
        %v352 = vld [vmem:[%s331 + $0x48] sm:$0xf]
        %v353 = vld [vmem:[%s331 + $0x4c] sm:$0xf]
        %v354 = vld [vmem:[%s331 + $0x50] sm:$0xf]
        %v355 = vld [vmem:[%s331 + $0x54] sm:$0xf]
        %v356 = vld [vmem:[%s331 + $0x58] sm:$0xf]
        %v357 = vld [vmem:[%s331 + $0x5c] sm:$0xf]
        %v358 = vld [vmem:[%s331 + $0x60] sm:$0xf]
        %v359 = vld [vmem:[%s331 + $0x64] sm:$0xf]
        %v360 = vld [vmem:[%s331 + $0x68] sm:$0xf]
        %v361 = vld [vmem:[%s331 + $0x6c] sm:$0xf]
        %v362 = vld [vmem:[%s331 + $0x70] sm:$0xf]
        %v363 = vld [vmem:[%s331 + $0x74] sm:$0xf]
        %v364 = vld [vmem:[%s331 + $0x78] sm:$0xf]
        %v365 = vld [vmem:[%s331 + $0x7c] sm:$0xf]
        %v366 = vld [vmem:[%s331 + $0x80] sm:$0xf]
        %v367 = vld [vmem:[%s331 + $0x84] sm:$0xf]
        %v368 = vld [vmem:[%s331 + $0x88] sm:$0xf]
        %v369 = vld [vmem:[%s331 + $0x8c] sm:$0xf]
        %v370 = vld [vmem:[%s331 + $0x90] sm:$0xf]
        %v371 = vld [vmem:[%s331 + $0x94] sm:$0xf]
        %v372 = vld [vmem:[%s331 + $0x98] sm:$0xf]
        %v373 = vld [vmem:[%s331 + $0x9c] sm:$0xf]
        %v374 = vld [vmem:[%s331 + $0xa0] sm:$0xf]
        %v375 = vld [vmem:[%s331 + $0xa4] sm:$0xf]
        %v376 = vld [vmem:[%s331 + $0xa8] sm:$0xf]
        %v377 = vld [vmem:[%s331 + $0xac] sm:$0xf]
        %v378 = vld [vmem:[%s331 + $0xb0] sm:$0xf]
        %v379 = vld [vmem:[%s331 + $0xb4] sm:$0xf]
        %v380 = vld [vmem:[%s331 + $0xb8] sm:$0xf]
        %v381 = vld [vmem:[%s331 + $0xbc] sm:$0xf]
        %v382 = vld [vmem:[%s331 + $0xc0] sm:$0xf]
        %v383 = vld [vmem:[%s331 + $0xc4] sm:$0xf]
        %v384 = vld [vmem:[%s331 + $0xc8] sm:$0xf]
        %v385 = vld [vmem:[%s331 + $0xcc] sm:$0xf]
        %v386 = vld [vmem:[%s331 + $0xd0] sm:$0xf]
        %v387 = vld [vmem:[%s331 + $0xd4] sm:$0xf]
        %v388 = vld [vmem:[%s331 + $0xd8] sm:$0xf]
        %v389 = vld [vmem:[%s331 + $0xdc] sm:$0xf]
        %v390 = vld [vmem:[%s331 + $0xe0] sm:$0xf]
        %v391 = vld [vmem:[%s331 + $0xe4] sm:$0xf]
        %v392 = vld [vmem:[%s331 + $0xe8] sm:$0xf]
        %v393 = vld [vmem:[%s331 + $0xec] sm:$0xf]
        %v394 = vld [vmem:[%s331 + $0xf0] sm:$0xf]
        %v395 = vld [vmem:[%s331 + $0xf4] sm:$0xf]
        %v396 = vld [vmem:[%s331 + $0xf8] sm:$0xf]
        %v397 = vld [vmem:[%s331 + $0xfc] sm:$0xf]
        %v398 = vld [vmem:[%s1] sm:$0xf]
        %v399 = vld [vmem:[%s1 + $0x4] sm:$0xf]
        %v400 = vld [vmem:[%s1 + $0x8] sm:$0xf]
        %v401 = vld [vmem:[%s1 + $0xc] sm:$0xf]
        %v466 = vunpack.c.l.b16 %v334
        %v467 = vunpack.c.l.b16 %v335
        %v468 = vunpack.c.l.b16 %v336
        %v469 = vunpack.c.l.b16 %v337
        %v470 = vunpack.c.l.b16 %v338
        %v471 = vunpack.c.l.b16 %v339
        %v472 = vunpack.c.l.b16 %v340
        %v473 = vunpack.c.l.b16 %v341
        %v474 = vunpack.c.l.b16 %v342
        %v475 = vunpack.c.l.b16 %v343
        %v476 = vunpack.c.l.b16 %v344
        %v477 = vunpack.c.l.b16 %v345
        %v478 = vunpack.c.l.b16 %v346
        %v479 = vunpack.c.l.b16 %v347
        %v480 = vunpack.c.l.b16 %v348
        %v481 = vunpack.c.l.b16 %v349
        %v482 = vunpack.c.l.b16 %v350
        %v483 = vunpack.c.l.b16 %v351
        %v484 = vunpack.c.l.b16 %v352
        %v485 = vunpack.c.l.b16 %v353
        %v486 = vunpack.c.l.b16 %v354
        %v487 = vunpack.c.l.b16 %v355
        %v488 = vunpack.c.l.b16 %v356
        %v489 = vunpack.c.l.b16 %v357
        %v490 = vunpack.c.l.b16 %v358
        %v491 = vunpack.c.l.b16 %v359
        %v492 = vunpack.c.l.b16 %v360
        %v493 = vunpack.c.l.b16 %v361
        %v494 = vunpack.c.l.b16 %v362
        %v495 = vunpack.c.l.b16 %v363
        %v496 = vunpack.c.l.b16 %v364
        %v497 = vunpack.c.l.b16 %v365
        %v498 = vunpack.c.l.b16 %v366
        %v499 = vunpack.c.l.b16 %v367
        %v500 = vunpack.c.l.b16 %v368
        %v501 = vunpack.c.l.b16 %v369
        %v502 = vunpack.c.l.b16 %v370
        %v503 = vunpack.c.l.b16 %v371
        %v504 = vunpack.c.l.b16 %v372
        %v505 = vunpack.c.l.b16 %v373
        %v506 = vunpack.c.l.b16 %v374
        %v507 = vunpack.c.l.b16 %v375
        %v508 = vunpack.c.l.b16 %v376
        %v509 = vunpack.c.l.b16 %v377
        %v510 = vunpack.c.l.b16 %v378
        %v511 = vunpack.c.l.b16 %v379
        %v512 = vunpack.c.l.b16 %v380
        %v513 = vunpack.c.l.b16 %v381
        %v514 = vunpack.c.l.b16 %v382
        %v515 = vunpack.c.l.b16 %v383
        %v516 = vunpack.c.l.b16 %v384
        %v517 = vunpack.c.l.b16 %v385
        %v518 = vunpack.c.l.b16 %v386
        %v519 = vunpack.c.l.b16 %v387
        %v520 = vunpack.c.l.b16 %v388
        %v521 = vunpack.c.l.b16 %v389
        %v522 = vunpack.c.l.b16 %v390
        %v523 = vunpack.c.l.b16 %v391
        %v524 = vunpack.c.l.b16 %v392
        %v525 = vunpack.c.l.b16 %v393
        %v526 = vunpack.c.l.b16 %v394
        %v527 = vunpack.c.l.b16 %v395
        %v528 = vunpack.c.l.b16 %v396
        %v529 = vunpack.c.l.b16 %v397
        %v530 = vpack.c.b16 %v467, %v466
        %v531 = vpack.c.b16 %v469, %v468
        %v532 = vpack.c.b16 %v471, %v470
        %v533 = vpack.c.b16 %v473, %v472
        %v534 = vpack.c.b16 %v475, %v474
        %v535 = vpack.c.b16 %v477, %v476
        %v536 = vpack.c.b16 %v479, %v478
        %v537 = vpack.c.b16 %v481, %v480
        %v538 = vpack.c.b16 %v483, %v482
        %v539 = vpack.c.b16 %v485, %v484
        %v540 = vpack.c.b16 %v487, %v486
        %v541 = vpack.c.b16 %v489, %v488
        %v542 = vpack.c.b16 %v491, %v490
        %v543 = vpack.c.b16 %v493, %v492
        %v544 = vpack.c.b16 %v495, %v494
        %v545 = vpack.c.b16 %v497, %v496
        %v546 = vpack.c.b16 %v499, %v498
        %v547 = vpack.c.b16 %v501, %v500
        %v548 = vpack.c.b16 %v503, %v502
        %v549 = vpack.c.b16 %v505, %v504
        %v550 = vpack.c.b16 %v507, %v506
        %v551 = vpack.c.b16 %v509, %v508
        %v552 = vpack.c.b16 %v511, %v510
        %v553 = vpack.c.b16 %v513, %v512
        %v554 = vpack.c.b16 %v515, %v514
        %v555 = vpack.c.b16 %v517, %v516
        %v556 = vpack.c.b16 %v519, %v518
        %v557 = vpack.c.b16 %v521, %v520
        %v558 = vpack.c.b16 %v523, %v522
        %v559 = vpack.c.b16 %v525, %v524
        %v560 = vpack.c.b16 %v527, %v526
        %v561 = vpack.c.b16 %v529, %v528
        %v566 = vunpack.c.l.b16 %v398
        %v567 = vunpack.c.l.b16 %v399
        %v568 = vunpack.c.l.b16 %v400
        %v569 = vunpack.c.l.b16 %v401
        %v570 = vpack.c.b16 %v567, %v566
        %v571 = vpack.c.b16 %v569, %v568
        %vm574 = vcmask 261120
        %v576 = vsel %vm574, %v530, 0
        %v579 = vsel %vm574, %v531, 0
        %v582 = vsel %vm574, %v532, 0
        %v585 = vsel %vm574, %v533, 0
        %v588 = vsel %vm574, %v534, 0
        %v591 = vsel %vm574, %v535, 0
        %v594 = vsel %vm574, %v536, 0
        %v597 = vsel %vm574, %v537, 0
        %v600 = vsel %vm574, %v538, 0
        %v603 = vsel %vm574, %v539, 0
        %v606 = vsel %vm574, %v540, 0
        %v609 = vsel %vm574, %v541, 0
        %v612 = vsel %vm574, %v542, 0
        %v615 = vsel %vm574, %v543, 0
        %v618 = vsel %vm574, %v544, 0
        %v621 = vsel %vm574, %v545, 0
        %v624 = vsel %vm574, %v546, 0
        %v627 = vsel %vm574, %v547, 0
        %v630 = vsel %vm574, %v548, 0
        %v633 = vsel %vm574, %v549, 0
        %v636 = vsel %vm574, %v550, 0
        %v639 = vsel %vm574, %v551, 0
        %v642 = vsel %vm574, %v552, 0
        %v645 = vsel %vm574, %v553, 0
        %v648 = vsel %vm574, %v554, 0
        %v651 = vsel %vm574, %v555, 0
        %v654 = vsel %vm574, %v556, 0
        %v657 = vsel %vm574, %v557, 0
        %v660 = vsel %vm574, %v558, 0
        %v663 = vsel %vm574, %v559, 0
        %v666 = vsel %vm574, %v560, 0
        %v669 = vsel %vm574, %v561, 0
        %671 = vmatpush.bf16.msra.mxu0 0
        %672 = vmatpush.bf16.msra.mxu0 0
        %673 = vmatpush.bf16.msra.mxu0 0
        %674 = vmatpush.bf16.msra.mxu0 0
        %675 = vmatpush.bf16.msra.mxu0 0
        %676 = vmatpush.bf16.msra.mxu0 0
        %677 = vmatpush.bf16.msra.mxu0 %v571
        %678 = vmatpush.bf16.msra.mxu0 %v570
        %679 = vmatmul.bf16.gmra.mxu0 %v576
        %v680 = vpop.f32.mrf.mxu0
        %v681 = vadd.f32 0.0, %v680
        %v682 = vpop.f32.mrf.mxu0
        %v683 = vadd.f32 0.0, %v682
        %684 = vmatmul.bf16.gmra.mxu0 %v579
        %v685 = vpop.f32.mrf.mxu0
        %v686 = vadd.f32 0.0, %v685
        %v687 = vpop.f32.mrf.mxu0
        %v688 = vadd.f32 0.0, %v687
        %689 = vmatmul.bf16.gmra.mxu0 %v582
        %v690 = vpop.f32.mrf.mxu0
        %v691 = vadd.f32 0.0, %v690
        %v692 = vpop.f32.mrf.mxu0
        %v693 = vadd.f32 0.0, %v692
        %694 = vmatmul.bf16.gmra.mxu0 %v585
        %v695 = vpop.f32.mrf.mxu0
        %v696 = vadd.f32 0.0, %v695
        %v697 = vpop.f32.mrf.mxu0
        %v698 = vadd.f32 0.0, %v697
        %699 = vmatmul.bf16.gmra.mxu0 %v588
        %v700 = vpop.f32.mrf.mxu0
        %v701 = vadd.f32 0.0, %v700
        %v702 = vpop.f32.mrf.mxu0
        %v703 = vadd.f32 0.0, %v702
        %704 = vmatmul.bf16.gmra.mxu0 %v591
        %v705 = vpop.f32.mrf.mxu0
        %v706 = vadd.f32 0.0, %v705
        %v707 = vpop.f32.mrf.mxu0
        %v708 = vadd.f32 0.0, %v707
        %709 = vmatmul.bf16.gmra.mxu0 %v594
        %v710 = vpop.f32.mrf.mxu0
        %v711 = vadd.f32 0.0, %v710
        %v712 = vpop.f32.mrf.mxu0
        %v713 = vadd.f32 0.0, %v712
        %714 = vmatmul.bf16.gmra.mxu0 %v597
        %v715 = vpop.f32.mrf.mxu0
        %v716 = vadd.f32 0.0, %v715
        %v717 = vpop.f32.mrf.mxu0
        %v718 = vadd.f32 0.0, %v717
        %719 = vmatmul.bf16.gmra.mxu0 %v600
        %v720 = vpop.f32.mrf.mxu0
        %v721 = vadd.f32 0.0, %v720
        %v722 = vpop.f32.mrf.mxu0
        %v723 = vadd.f32 0.0, %v722
        %724 = vmatmul.bf16.gmra.mxu0 %v603
        %v725 = vpop.f32.mrf.mxu0
        %v726 = vadd.f32 0.0, %v725
        %v727 = vpop.f32.mrf.mxu0
        %v728 = vadd.f32 0.0, %v727
        %729 = vmatmul.bf16.gmra.mxu0 %v606
        %v730 = vpop.f32.mrf.mxu0
        %v731 = vadd.f32 0.0, %v730
        %v732 = vpop.f32.mrf.mxu0
        %v733 = vadd.f32 0.0, %v732
        %734 = vmatmul.bf16.gmra.mxu0 %v609
        %v735 = vpop.f32.mrf.mxu0
        %v736 = vadd.f32 0.0, %v735
        %v737 = vpop.f32.mrf.mxu0
        %v738 = vadd.f32 0.0, %v737
        %739 = vmatmul.bf16.gmra.mxu0 %v612
        %v740 = vpop.f32.mrf.mxu0
        %v741 = vadd.f32 0.0, %v740
        %v742 = vpop.f32.mrf.mxu0
        %v743 = vadd.f32 0.0, %v742
        %744 = vmatmul.bf16.gmra.mxu0 %v615
        %v745 = vpop.f32.mrf.mxu0
        %v746 = vadd.f32 0.0, %v745
        %v747 = vpop.f32.mrf.mxu0
        %v748 = vadd.f32 0.0, %v747
        %749 = vmatmul.bf16.gmra.mxu0 %v618
        %v750 = vpop.f32.mrf.mxu0
        %v751 = vadd.f32 0.0, %v750
        %v752 = vpop.f32.mrf.mxu0
        %v753 = vadd.f32 0.0, %v752
        %754 = vmatmul.bf16.gmra.mxu0 %v621
        %v755 = vpop.f32.mrf.mxu0
        %v756 = vadd.f32 0.0, %v755
        %v757 = vpop.f32.mrf.mxu0
        %v758 = vadd.f32 0.0, %v757
        %759 = vmatmul.bf16.gmra.mxu0 %v624
        %v760 = vpop.f32.mrf.mxu0
        %v761 = vadd.f32 0.0, %v760
        %v762 = vpop.f32.mrf.mxu0
        %v763 = vadd.f32 0.0, %v762
        %764 = vmatmul.bf16.gmra.mxu0 %v627
        %v765 = vpop.f32.mrf.mxu0
        %v766 = vadd.f32 0.0, %v765
        %v767 = vpop.f32.mrf.mxu0
        %v768 = vadd.f32 0.0, %v767
        %769 = vmatmul.bf16.gmra.mxu0 %v630
        %v770 = vpop.f32.mrf.mxu0
        %v771 = vadd.f32 0.0, %v770
        %v772 = vpop.f32.mrf.mxu0
        %v773 = vadd.f32 0.0, %v772
        %774 = vmatmul.bf16.gmra.mxu0 %v633
        %v775 = vpop.f32.mrf.mxu0
        %v776 = vadd.f32 0.0, %v775
        %v777 = vpop.f32.mrf.mxu0
        %v778 = vadd.f32 0.0, %v777
        %779 = vmatmul.bf16.gmra.mxu0 %v636
        %v780 = vpop.f32.mrf.mxu0
        %v781 = vadd.f32 0.0, %v780
        %v782 = vpop.f32.mrf.mxu0
        %v783 = vadd.f32 0.0, %v782
        %784 = vmatmul.bf16.gmra.mxu0 %v639
        %v785 = vpop.f32.mrf.mxu0
        %v786 = vadd.f32 0.0, %v785
        %v787 = vpop.f32.mrf.mxu0
        %v788 = vadd.f32 0.0, %v787
        %789 = vmatmul.bf16.gmra.mxu0 %v642
        %v790 = vpop.f32.mrf.mxu0
        %v791 = vadd.f32 0.0, %v790
        %v792 = vpop.f32.mrf.mxu0
        %v793 = vadd.f32 0.0, %v792
        %794 = vmatmul.bf16.gmra.mxu0 %v645
        %v795 = vpop.f32.mrf.mxu0
        %v796 = vadd.f32 0.0, %v795
        %v797 = vpop.f32.mrf.mxu0
        %v798 = vadd.f32 0.0, %v797
        %799 = vmatmul.bf16.gmra.mxu0 %v648
        %v800 = vpop.f32.mrf.mxu0
        %v801 = vadd.f32 0.0, %v800
        %v802 = vpop.f32.mrf.mxu0
        %v803 = vadd.f32 0.0, %v802
        %804 = vmatmul.bf16.gmra.mxu0 %v651
        %v805 = vpop.f32.mrf.mxu0
        %v806 = vadd.f32 0.0, %v805
        %v807 = vpop.f32.mrf.mxu0
        %v808 = vadd.f32 0.0, %v807
        %809 = vmatmul.bf16.gmra.mxu0 %v654
        %v810 = vpop.f32.mrf.mxu0
        %v811 = vadd.f32 0.0, %v810
        %v812 = vpop.f32.mrf.mxu0
        %v813 = vadd.f32 0.0, %v812
        %814 = vmatmul.bf16.gmra.mxu0 %v657
        %v815 = vpop.f32.mrf.mxu0
        %v816 = vadd.f32 0.0, %v815
        %v817 = vpop.f32.mrf.mxu0
        %v818 = vadd.f32 0.0, %v817
        %819 = vmatmul.bf16.gmra.mxu0 %v660
        %v820 = vpop.f32.mrf.mxu0
        %v821 = vadd.f32 0.0, %v820
        %v822 = vpop.f32.mrf.mxu0
        %v823 = vadd.f32 0.0, %v822
        %824 = vmatmul.bf16.gmra.mxu0 %v663
        %v825 = vpop.f32.mrf.mxu0
        %v826 = vadd.f32 0.0, %v825
        %v827 = vpop.f32.mrf.mxu0
        %v828 = vadd.f32 0.0, %v827
        %829 = vmatmul.bf16.gmra.mxu0 %v666
        %v830 = vpop.f32.mrf.mxu0
        %v831 = vadd.f32 0.0, %v830
        %v832 = vpop.f32.mrf.mxu0
        %v833 = vadd.f32 0.0, %v832
        %834 = vmatmul.bf16.gmra.mxu0 %v669
        %v835 = vpop.f32.mrf.mxu0
        %v836 = vadd.f32 0.0, %v835
        %v837 = vpop.f32.mrf.mxu0
        %v838 = vadd.f32 0.0, %v837
        %839 = vdwg.mxu0
        %p840 = scmp.eq.s32.totalorder %s25, 0
        %p841 = scmp.eq.s32.totalorder %s26, 0
        %p842 = pnand %p840, %p841
        %p843 = pneg %p842
        // Predicated region
        $region57: #{tpu_custom_call.1} parent=55 // pred_check
          _
        $region58: #{tpu_custom_call.1} parent=55 // pred_check_branch
          %845 = sbr.rel (%p842) target = $region60
        $region59: #{tpu_custom_call.1} parent=55 // pred_region
          %vm846 = vcmask 516096
          %847 = vst.msk [vmem:[#allocation2] sm:$0x1] %vm846, 0.0
          %848 = vst.msk [vmem:[#allocation3] sm:$0x1] %vm846, 0.0
        $region60: #{tpu_custom_call.1} parent=55 // pred_fallthru
          _
        // Predicated region
        $region61: #{tpu_custom_call.1} parent=55 // pred_check
          %p849 = pneg %p840
        $region62: #{tpu_custom_call.1} parent=55 // pred_check_branch
          %851 = sbr.rel (%p849) target = $region64
        $region63: #{tpu_custom_call.1} parent=55 // pred_region
          %v852 = vld [vmem:[#allocation2] sm:$0x1]
          %vm853 = vcmask 523264
          %v854 = vsel %vm853, %v681, 0.0
          %v855 = vsel %vm853, %v683, 0.0
          %v856 = vadd.f32 %v854, %v855
          %v857 = vsel %vm853, %v686, 0.0
          %v858 = vadd.f32 %v856, %v857
          %v859 = vsel %vm853, %v688, 0.0
          %v860 = vadd.f32 %v858, %v859
          %v861 = vsel %vm853, %v691, 0.0
          %v862 = vadd.f32 %v860, %v861
          %v863 = vsel %vm853, %v693, 0.0
          %v864 = vadd.f32 %v862, %v863
          %v865 = vsel %vm853, %v696, 0.0
          %v866 = vadd.f32 %v864, %v865
          %v867 = vsel %vm853, %v698, 0.0
          %v868 = vadd.f32 %v866, %v867
          %v869 = vsel %vm853, %v701, 0.0
          %v870 = vadd.f32 %v868, %v869
          %v871 = vsel %vm853, %v703, 0.0
          %v872 = vadd.f32 %v870, %v871
          %v873 = vsel %vm853, %v706, 0.0
          %v874 = vadd.f32 %v872, %v873
          %v875 = vsel %vm853, %v708, 0.0
          %v876 = vadd.f32 %v874, %v875
          %v877 = vsel %vm853, %v711, 0.0
          %v878 = vadd.f32 %v876, %v877
          %v879 = vsel %vm853, %v713, 0.0
          %v880 = vadd.f32 %v878, %v879
          %v881 = vsel %vm853, %v716, 0.0
          %v882 = vadd.f32 %v880, %v881
          %v883 = vsel %vm853, %v718, 0.0
          %v884 = vadd.f32 %v882, %v883
          %v885 = vsel %vm853, %v721, 0.0
          %v886 = vadd.f32 %v884, %v885
          %v887 = vsel %vm853, %v723, 0.0
          %v888 = vadd.f32 %v886, %v887
          %v889 = vsel %vm853, %v726, 0.0
          %v890 = vadd.f32 %v888, %v889
          %v891 = vsel %vm853, %v728, 0.0
          %v892 = vadd.f32 %v890, %v891
          %v893 = vsel %vm853, %v731, 0.0
          %v894 = vadd.f32 %v892, %v893
          %v895 = vsel %vm853, %v733, 0.0
          %v896 = vadd.f32 %v894, %v895
          %v897 = vsel %vm853, %v736, 0.0
          %v898 = vadd.f32 %v896, %v897
          %v899 = vsel %vm853, %v738, 0.0
          %v900 = vadd.f32 %v898, %v899
          %v901 = vsel %vm853, %v741, 0.0
          %v902 = vadd.f32 %v900, %v901
          %v903 = vsel %vm853, %v743, 0.0
          %v904 = vadd.f32 %v902, %v903
          %v905 = vsel %vm853, %v746, 0.0
          %v906 = vadd.f32 %v904, %v905
          %v907 = vsel %vm853, %v748, 0.0
          %v908 = vadd.f32 %v906, %v907
          %v909 = vsel %vm853, %v751, 0.0
          %v910 = vadd.f32 %v908, %v909
          %v911 = vsel %vm853, %v753, 0.0
          %v912 = vadd.f32 %v910, %v911
          %v913 = vsel %vm853, %v756, 0.0
          %v914 = vadd.f32 %v912, %v913
          %v915 = vsel %vm853, %v758, 0.0
          %v916 = vadd.f32 %v914, %v915
          %v917 = vsel %vm853, %v761, 0.0
          %v918 = vadd.f32 %v916, %v917
          %v919 = vsel %vm853, %v763, 0.0
          %v920 = vadd.f32 %v918, %v919
          %v921 = vsel %vm853, %v766, 0.0
          %v922 = vadd.f32 %v920, %v921
          %v923 = vsel %vm853, %v768, 0.0
          %v924 = vadd.f32 %v922, %v923
          %v925 = vsel %vm853, %v771, 0.0
          %v926 = vadd.f32 %v924, %v925
          %v927 = vsel %vm853, %v773, 0.0
          %v928 = vadd.f32 %v926, %v927
          %v929 = vsel %vm853, %v776, 0.0
          %v930 = vadd.f32 %v928, %v929
          %v931 = vsel %vm853, %v778, 0.0
          %v932 = vadd.f32 %v930, %v931
          %v933 = vsel %vm853, %v781, 0.0
          %v934 = vadd.f32 %v932, %v933
          %v935 = vsel %vm853, %v783, 0.0
          %v936 = vadd.f32 %v934, %v935
          %v937 = vsel %vm853, %v786, 0.0
          %v938 = vadd.f32 %v936, %v937
          %v939 = vsel %vm853, %v788, 0.0
          %v940 = vadd.f32 %v938, %v939
          %v941 = vsel %vm853, %v791, 0.0
          %v942 = vadd.f32 %v940, %v941
          %v943 = vsel %vm853, %v793, 0.0
          %v944 = vadd.f32 %v942, %v943
          %v945 = vsel %vm853, %v796, 0.0
          %v946 = vadd.f32 %v944, %v945
          %v947 = vsel %vm853, %v798, 0.0
          %v948 = vadd.f32 %v946, %v947
          %v949 = vsel %vm853, %v801, 0.0
          %v950 = vadd.f32 %v948, %v949
          %v951 = vsel %vm853, %v803, 0.0
          %v952 = vadd.f32 %v950, %v951
          %v953 = vsel %vm853, %v806, 0.0
          %v954 = vadd.f32 %v952, %v953
          %v955 = vsel %vm853, %v808, 0.0
          %v956 = vadd.f32 %v954, %v955
          %v957 = vsel %vm853, %v811, 0.0
          %v958 = vadd.f32 %v956, %v957
          %v959 = vsel %vm853, %v813, 0.0
          %v960 = vadd.f32 %v958, %v959
          %v961 = vsel %vm853, %v816, 0.0
          %v962 = vadd.f32 %v960, %v961
          %v963 = vsel %vm853, %v818, 0.0
          %v964 = vadd.f32 %v962, %v963
          %v965 = vsel %vm853, %v821, 0.0
          %v966 = vadd.f32 %v964, %v965
          %v967 = vsel %vm853, %v823, 0.0
          %v968 = vadd.f32 %v966, %v967
          %v969 = vsel %vm853, %v826, 0.0
          %v970 = vadd.f32 %v968, %v969
          %v971 = vsel %vm853, %v828, 0.0
          %v972 = vadd.f32 %v970, %v971
          %v973 = vsel %vm853, %v831, 0.0
          %v974 = vadd.f32 %v972, %v973
          %v975 = vsel %vm853, %v833, 0.0
          %v976 = vadd.f32 %v974, %v975
          %v977 = vsel %vm853, %v836, 0.0
          %v978 = vadd.f32 %v976, %v977
          %v979 = vsel %vm853, %v838, 0.0
          %v980 = vadd.f32 %v978, %v979
          %v981 = vrot.slane %v980, 4
          %v982 = vadd.f32 %v980, %v981
          %v983 = vrot.slane %v982, 2
          %v984 = vadd.f32 %v982, %v983
          %v985 = vrot.slane %v984, 1
          %v986 = vadd.f32 %v984, %v985
          %v987 = vadd.f32 %v852, %v986
          %vm988 = vcmask 516096
          %989 = vst.msk [vmem:[#allocation2] sm:$0x1] %vm988, %v987
          %v990 = vld [vmem:[#allocation3] sm:$0x1]
          %v991 = vmul.f32 %v681, %v681
          %v992 = vmul.f32 %v683, %v683
          %v993 = vmul.f32 %v686, %v686
          %v994 = vmul.f32 %v688, %v688
          %v995 = vmul.f32 %v691, %v691
          %v996 = vmul.f32 %v693, %v693
          %v997 = vmul.f32 %v696, %v696
          %v998 = vmul.f32 %v698, %v698
          %v999 = vmul.f32 %v701, %v701
          %v1000 = vmul.f32 %v703, %v703
          %v1001 = vmul.f32 %v706, %v706
          %v1002 = vmul.f32 %v708, %v708
          %v1003 = vmul.f32 %v711, %v711
          %v1004 = vmul.f32 %v713, %v713
          %v1005 = vmul.f32 %v716, %v716
          %v1006 = vmul.f32 %v718, %v718
          %v1007 = vmul.f32 %v721, %v721
          %v1008 = vmul.f32 %v723, %v723
          %v1009 = vmul.f32 %v726, %v726
          %v1010 = vmul.f32 %v728, %v728
          %v1011 = vmul.f32 %v731, %v731
          %v1012 = vmul.f32 %v733, %v733
          %v1013 = vmul.f32 %v736, %v736
          %v1014 = vmul.f32 %v738, %v738
          %v1015 = vmul.f32 %v741, %v741
          %v1016 = vmul.f32 %v743, %v743
          %v1017 = vmul.f32 %v746, %v746
          %v1018 = vmul.f32 %v748, %v748
          %v1019 = vmul.f32 %v751, %v751
          %v1020 = vmul.f32 %v753, %v753
          %v1021 = vmul.f32 %v756, %v756
          %v1022 = vmul.f32 %v758, %v758
          %v1023 = vmul.f32 %v761, %v761
          %v1024 = vmul.f32 %v763, %v763
          %v1025 = vmul.f32 %v766, %v766
          %v1026 = vmul.f32 %v768, %v768
          %v1027 = vmul.f32 %v771, %v771
          %v1028 = vmul.f32 %v773, %v773
          %v1029 = vmul.f32 %v776, %v776
          %v1030 = vmul.f32 %v778, %v778
          %v1031 = vmul.f32 %v781, %v781
          %v1032 = vmul.f32 %v783, %v783
          %v1033 = vmul.f32 %v786, %v786
          %v1034 = vmul.f32 %v788, %v788
          %v1035 = vmul.f32 %v791, %v791
          %v1036 = vmul.f32 %v793, %v793
          %v1037 = vmul.f32 %v796, %v796
          %v1038 = vmul.f32 %v798, %v798
          %v1039 = vmul.f32 %v801, %v801
          %v1040 = vmul.f32 %v803, %v803
          %v1041 = vmul.f32 %v806, %v806
          %v1042 = vmul.f32 %v808, %v808
          %v1043 = vmul.f32 %v811, %v811
          %v1044 = vmul.f32 %v813, %v813
          %v1045 = vmul.f32 %v816, %v816
          %v1046 = vmul.f32 %v818, %v818
          %v1047 = vmul.f32 %v821, %v821
          %v1048 = vmul.f32 %v823, %v823
          %v1049 = vmul.f32 %v826, %v826
          %v1050 = vmul.f32 %v828, %v828
          %v1051 = vmul.f32 %v831, %v831
          %v1052 = vmul.f32 %v833, %v833
          %v1053 = vmul.f32 %v836, %v836
          %v1054 = vmul.f32 %v838, %v838
          %v1055 = vsel %vm853, %v991, 0.0
          %v1056 = vsel %vm853, %v992, 0.0
          %v1057 = vadd.f32 %v1055, %v1056
          %v1058 = vsel %vm853, %v993, 0.0
          %v1059 = vadd.f32 %v1057, %v1058
          %v1060 = vsel %vm853, %v994, 0.0
          %v1061 = vadd.f32 %v1059, %v1060
          %v1062 = vsel %vm853, %v995, 0.0
          %v1063 = vadd.f32 %v1061, %v1062
          %v1064 = vsel %vm853, %v996, 0.0
          %v1065 = vadd.f32 %v1063, %v1064
          %v1066 = vsel %vm853, %v997, 0.0
          %v1067 = vadd.f32 %v1065, %v1066
          %v1068 = vsel %vm853, %v998, 0.0
          %v1069 = vadd.f32 %v1067, %v1068
          %v1070 = vsel %vm853, %v999, 0.0
          %v1071 = vadd.f32 %v1069, %v1070
          %v1072 = vsel %vm853, %v1000, 0.0
          %v1073 = vadd.f32 %v1071, %v1072
          %v1074 = vsel %vm853, %v1001, 0.0
          %v1075 = vadd.f32 %v1073, %v1074
          %v1076 = vsel %vm853, %v1002, 0.0
          %v1077 = vadd.f32 %v1075, %v1076
          %v1078 = vsel %vm853, %v1003, 0.0
          %v1079 = vadd.f32 %v1077, %v1078
          %v1080 = vsel %vm853, %v1004, 0.0
          %v1081 = vadd.f32 %v1079, %v1080
          %v1082 = vsel %vm853, %v1005, 0.0
          %v1083 = vadd.f32 %v1081, %v1082
          %v1084 = vsel %vm853, %v1006, 0.0
          %v1085 = vadd.f32 %v1083, %v1084
          %v1086 = vsel %vm853, %v1007, 0.0
          %v1087 = vadd.f32 %v1085, %v1086
          %v1088 = vsel %vm853, %v1008, 0.0
          %v1089 = vadd.f32 %v1087, %v1088
          %v1090 = vsel %vm853, %v1009, 0.0
          %v1091 = vadd.f32 %v1089, %v1090
          %v1092 = vsel %vm853, %v1010, 0.0
          %v1093 = vadd.f32 %v1091, %v1092
          %v1094 = vsel %vm853, %v1011, 0.0
          %v1095 = vadd.f32 %v1093, %v1094
          %v1096 = vsel %vm853, %v1012, 0.0
          %v1097 = vadd.f32 %v1095, %v1096
          %v1098 = vsel %vm853, %v1013, 0.0
          %v1099 = vadd.f32 %v1097, %v1098
          %v1100 = vsel %vm853, %v1014, 0.0
          %v1101 = vadd.f32 %v1099, %v1100
          %v1102 = vsel %vm853, %v1015, 0.0
          %v1103 = vadd.f32 %v1101, %v1102
          %v1104 = vsel %vm853, %v1016, 0.0
          %v1105 = vadd.f32 %v1103, %v1104
          %v1106 = vsel %vm853, %v1017, 0.0
          %v1107 = vadd.f32 %v1105, %v1106
          %v1108 = vsel %vm853, %v1018, 0.0
          %v1109 = vadd.f32 %v1107, %v1108
          %v1110 = vsel %vm853, %v1019, 0.0
          %v1111 = vadd.f32 %v1109, %v1110
          %v1112 = vsel %vm853, %v1020, 0.0
          %v1113 = vadd.f32 %v1111, %v1112
          %v1114 = vsel %vm853, %v1021, 0.0
          %v1115 = vadd.f32 %v1113, %v1114
          %v1116 = vsel %vm853, %v1022, 0.0
          %v1117 = vadd.f32 %v1115, %v1116
          %v1118 = vsel %vm853, %v1023, 0.0
          %v1119 = vadd.f32 %v1117, %v1118
          %v1120 = vsel %vm853, %v1024, 0.0
          %v1121 = vadd.f32 %v1119, %v1120
          %v1122 = vsel %vm853, %v1025, 0.0
          %v1123 = vadd.f32 %v1121, %v1122
          %v1124 = vsel %vm853, %v1026, 0.0
          %v1125 = vadd.f32 %v1123, %v1124
          %v1126 = vsel %vm853, %v1027, 0.0
          %v1127 = vadd.f32 %v1125, %v1126
          %v1128 = vsel %vm853, %v1028, 0.0
          %v1129 = vadd.f32 %v1127, %v1128
          %v1130 = vsel %vm853, %v1029, 0.0
          %v1131 = vadd.f32 %v1129, %v1130
          %v1132 = vsel %vm853, %v1030, 0.0
          %v1133 = vadd.f32 %v1131, %v1132
          %v1134 = vsel %vm853, %v1031, 0.0
          %v1135 = vadd.f32 %v1133, %v1134
          %v1136 = vsel %vm853, %v1032, 0.0
          %v1137 = vadd.f32 %v1135, %v1136
          %v1138 = vsel %vm853, %v1033, 0.0
          %v1139 = vadd.f32 %v1137, %v1138
          %v1140 = vsel %vm853, %v1034, 0.0
          %v1141 = vadd.f32 %v1139, %v1140
          %v1142 = vsel %vm853, %v1035, 0.0
          %v1143 = vadd.f32 %v1141, %v1142
          %v1144 = vsel %vm853, %v1036, 0.0
          %v1145 = vadd.f32 %v1143, %v1144
          %v1146 = vsel %vm853, %v1037, 0.0
          %v1147 = vadd.f32 %v1145, %v1146
          %v1148 = vsel %vm853, %v1038, 0.0
          %v1149 = vadd.f32 %v1147, %v1148
          %v1150 = vsel %vm853, %v1039, 0.0
          %v1151 = vadd.f32 %v1149, %v1150
          %v1152 = vsel %vm853, %v1040, 0.0
          %v1153 = vadd.f32 %v1151, %v1152
          %v1154 = vsel %vm853, %v1041, 0.0
          %v1155 = vadd.f32 %v1153, %v1154
          %v1156 = vsel %vm853, %v1042, 0.0
          %v1157 = vadd.f32 %v1155, %v1156
          %v1158 = vsel %vm853, %v1043, 0.0
          %v1159 = vadd.f32 %v1157, %v1158
          %v1160 = vsel %vm853, %v1044, 0.0
          %v1161 = vadd.f32 %v1159, %v1160
          %v1162 = vsel %vm853, %v1045, 0.0
          %v1163 = vadd.f32 %v1161, %v1162
          %v1164 = vsel %vm853, %v1046, 0.0
          %v1165 = vadd.f32 %v1163, %v1164
          %v1166 = vsel %vm853, %v1047, 0.0
          %v1167 = vadd.f32 %v1165, %v1166
          %v1168 = vsel %vm853, %v1048, 0.0
          %v1169 = vadd.f32 %v1167, %v1168
          %v1170 = vsel %vm853, %v1049, 0.0
          %v1171 = vadd.f32 %v1169, %v1170
          %v1172 = vsel %vm853, %v1050, 0.0
          %v1173 = vadd.f32 %v1171, %v1172
          %v1174 = vsel %vm853, %v1051, 0.0
          %v1175 = vadd.f32 %v1173, %v1174
          %v1176 = vsel %vm853, %v1052, 0.0
          %v1177 = vadd.f32 %v1175, %v1176
          %v1178 = vsel %vm853, %v1053, 0.0
          %v1179 = vadd.f32 %v1177, %v1178
          %v1180 = vsel %vm853, %v1054, 0.0
          %v1181 = vadd.f32 %v1179, %v1180
          %v1182 = vrot.slane %v1181, 4
          %v1183 = vadd.f32 %v1181, %v1182
          %v1184 = vrot.slane %v1183, 2
          %v1185 = vadd.f32 %v1183, %v1184
          %v1186 = vrot.slane %v1185, 1
          %v1187 = vadd.f32 %v1185, %v1186
          %v1188 = vadd.f32 %v990, %v1187
          %1189 = vst.msk [vmem:[#allocation3] sm:$0x1] %vm988, %v1188
        $region64: #{tpu_custom_call.1} parent=55 // pred_fallthru
          _
        %p1190 = scmp.eq.s32.totalorder %s25, 1
        %p1191 = pnand %p1190, %p841
        %p1192 = pneg %p1191
        // Predicated region
        $region65: #{tpu_custom_call.1} parent=55 // pred_check
          _
        $region66: #{tpu_custom_call.1} parent=55 // pred_check_branch
          %1194 = sbr.rel (%p1191) target = $region68
        $region67: #{tpu_custom_call.1} parent=55 // pred_region
          %v1195 = vld [vmem:[#allocation2] sm:$0x1]
          %v1196 = vmul.f32 %v1195, 0.0009765625
          %v1197 = vld [vmem:[#allocation3] sm:$0x1]
          %v1198 = vmul.f32 %v1197, 0.0009765625
          %v1199 = vmul.f32 %v1196, %v1196
          %v1200 = vsub.f32 %v1198, %v1199
          %v1201 = vmax.f32 %v1200, 0.0
          %v1202 = vadd.f32 %v1201, 1e-05
          %v1203 = vrsqrt.pop %v1202
          %v1204 = vmul.f32 %v1203, %v1202
          %v1205 = vmul.f32 %v1204, %v1203
          %v1206 = vmul.f32 0.5, %v1205
          %v1207 = vsub.f32 1.5, %v1206
          %v1208 = vmul.f32 %v1203, %v1207
          %vm1209 = vweird.f32 %v1202
          %vm1210 = vweird.f32 %v1203
          %vm1211 = vmor %vm1209, %vm1210
          %v1212 = vsel %vm1211, %v1203, %v1208
          %v1213 = vld [vmem:[%s2] sm:$0x1]
          %v1214 = vmul.f32 %v1213, %v1212
          %vm1215 = vcmask 516096
          %1216 = vst.msk [vmem:[#allocation4] sm:$0x1] %vm1215, %v1214
          %v1217 = vld [vmem:[%s3] sm:$0x1]
          %v1218 = vmul.f32 %v1213, %v1196
          %v1219 = vmul.f32 %v1218, %v1212
          %v1220 = vsub.f32 %v1217, %v1219
          %1221 = vst.msk [vmem:[#allocation5] sm:$0x1] %vm1215, %v1220
          %vm1222 = vcmask 519168
          %1223 = vst.msk [vmem:[#allocation6] sm:$0xf] %vm1222, 0.0
        $region68: #{tpu_custom_call.1} parent=55 // pred_fallthru
          _
        // Predicated region
        $region69: #{tpu_custom_call.1} parent=55 // pred_check
          %p1224 = pneg %p1190
        $region70: #{tpu_custom_call.1} parent=55 // pred_check_branch
          %1226 = sbr.rel (%p1224) target = $region72
        $region71: #{tpu_custom_call.1} parent=55 // pred_region
          %v1227 = vld [vmem:[#allocation4] sm:$0x1]
          %v1229 = vperm.slane %v1227, 0
          %v1231 = vmul.f32 %v681, %v1229
          %v1232 = vmul.f32 %v683, %v1229
          %v1233 = vmul.f32 %v686, %v1229
          %v1234 = vmul.f32 %v688, %v1229
          %v1235 = vmul.f32 %v691, %v1229
          %v1236 = vmul.f32 %v693, %v1229
          %v1237 = vmul.f32 %v696, %v1229
          %v1238 = vmul.f32 %v698, %v1229
          %v1239 = vmul.f32 %v701, %v1229
          %v1240 = vmul.f32 %v703, %v1229
          %v1241 = vmul.f32 %v706, %v1229
          %v1242 = vmul.f32 %v708, %v1229
          %v1243 = vmul.f32 %v711, %v1229
          %v1244 = vmul.f32 %v713, %v1229
          %v1245 = vmul.f32 %v716, %v1229
          %v1246 = vmul.f32 %v718, %v1229
          %v1247 = vmul.f32 %v721, %v1229
          %v1248 = vmul.f32 %v723, %v1229
          %v1249 = vmul.f32 %v726, %v1229
          %v1250 = vmul.f32 %v728, %v1229
          %v1251 = vmul.f32 %v731, %v1229
          %v1252 = vmul.f32 %v733, %v1229
          %v1253 = vmul.f32 %v736, %v1229
          %v1254 = vmul.f32 %v738, %v1229
          %v1255 = vmul.f32 %v741, %v1229
          %v1256 = vmul.f32 %v743, %v1229
          %v1257 = vmul.f32 %v746, %v1229
          %v1258 = vmul.f32 %v748, %v1229
          %v1259 = vmul.f32 %v751, %v1229
          %v1260 = vmul.f32 %v753, %v1229
          %v1261 = vmul.f32 %v756, %v1229
          %v1262 = vmul.f32 %v758, %v1229
          %v1263 = vmul.f32 %v761, %v1229
          %v1264 = vmul.f32 %v763, %v1229
          %v1265 = vmul.f32 %v766, %v1229
          %v1266 = vmul.f32 %v768, %v1229
          %v1267 = vmul.f32 %v771, %v1229
          %v1268 = vmul.f32 %v773, %v1229
          %v1269 = vmul.f32 %v776, %v1229
          %v1270 = vmul.f32 %v778, %v1229
          %v1271 = vmul.f32 %v781, %v1229
          %v1272 = vmul.f32 %v783, %v1229
          %v1273 = vmul.f32 %v786, %v1229
          %v1274 = vmul.f32 %v788, %v1229
          %v1275 = vmul.f32 %v791, %v1229
          %v1276 = vmul.f32 %v793, %v1229
          %v1277 = vmul.f32 %v796, %v1229
          %v1278 = vmul.f32 %v798, %v1229
          %v1279 = vmul.f32 %v801, %v1229
          %v1280 = vmul.f32 %v803, %v1229
          %v1281 = vmul.f32 %v806, %v1229
          %v1282 = vmul.f32 %v808, %v1229
          %v1283 = vmul.f32 %v811, %v1229
          %v1284 = vmul.f32 %v813, %v1229
          %v1285 = vmul.f32 %v816, %v1229
          %v1286 = vmul.f32 %v818, %v1229
          %v1287 = vmul.f32 %v821, %v1229
          %v1288 = vmul.f32 %v823, %v1229
          %v1289 = vmul.f32 %v826, %v1229
          %v1290 = vmul.f32 %v828, %v1229
          %v1291 = vmul.f32 %v831, %v1229
          %v1292 = vmul.f32 %v833, %v1229
          %v1293 = vmul.f32 %v836, %v1229
          %v1294 = vmul.f32 %v838, %v1229
          %v1295 = vld [vmem:[#allocation5] sm:$0x1]
          %v1297 = vperm.slane %v1295, 0
          %v1299 = vadd.f32 %v1231, %v1297
          %v1300 = vadd.f32 %v1232, %v1297
          %v1301 = vadd.f32 %v1233, %v1297
          %v1302 = vadd.f32 %v1234, %v1297
          %v1303 = vadd.f32 %v1235, %v1297
          %v1304 = vadd.f32 %v1236, %v1297
          %v1305 = vadd.f32 %v1237, %v1297
          %v1306 = vadd.f32 %v1238, %v1297
          %v1307 = vadd.f32 %v1239, %v1297
          %v1308 = vadd.f32 %v1240, %v1297
          %v1309 = vadd.f32 %v1241, %v1297
          %v1310 = vadd.f32 %v1242, %v1297
          %v1311 = vadd.f32 %v1243, %v1297
          %v1312 = vadd.f32 %v1244, %v1297
          %v1313 = vadd.f32 %v1245, %v1297
          %v1314 = vadd.f32 %v1246, %v1297
          %v1315 = vadd.f32 %v1247, %v1297
          %v1316 = vadd.f32 %v1248, %v1297
          %v1317 = vadd.f32 %v1249, %v1297
          %v1318 = vadd.f32 %v1250, %v1297
          %v1319 = vadd.f32 %v1251, %v1297
          %v1320 = vadd.f32 %v1252, %v1297
          %v1321 = vadd.f32 %v1253, %v1297
          %v1322 = vadd.f32 %v1254, %v1297
          %v1323 = vadd.f32 %v1255, %v1297
          %v1324 = vadd.f32 %v1256, %v1297
          %v1325 = vadd.f32 %v1257, %v1297
          %v1326 = vadd.f32 %v1258, %v1297
          %v1327 = vadd.f32 %v1259, %v1297
          %v1328 = vadd.f32 %v1260, %v1297
          %v1329 = vadd.f32 %v1261, %v1297
          %v1330 = vadd.f32 %v1262, %v1297
          %v1331 = vadd.f32 %v1263, %v1297
          %v1332 = vadd.f32 %v1264, %v1297
          %v1333 = vadd.f32 %v1265, %v1297
          %v1334 = vadd.f32 %v1266, %v1297
          %v1335 = vadd.f32 %v1267, %v1297
          %v1336 = vadd.f32 %v1268, %v1297
          %v1337 = vadd.f32 %v1269, %v1297
          %v1338 = vadd.f32 %v1270, %v1297
          %v1339 = vadd.f32 %v1271, %v1297
          %v1340 = vadd.f32 %v1272, %v1297
          %v1341 = vadd.f32 %v1273, %v1297
          %v1342 = vadd.f32 %v1274, %v1297
          %v1343 = vadd.f32 %v1275, %v1297
          %v1344 = vadd.f32 %v1276, %v1297
          %v1345 = vadd.f32 %v1277, %v1297
          %v1346 = vadd.f32 %v1278, %v1297
          %v1347 = vadd.f32 %v1279, %v1297
          %v1348 = vadd.f32 %v1280, %v1297
          %v1349 = vadd.f32 %v1281, %v1297
          %v1350 = vadd.f32 %v1282, %v1297
          %v1351 = vadd.f32 %v1283, %v1297
          %v1352 = vadd.f32 %v1284, %v1297
          %v1353 = vadd.f32 %v1285, %v1297
          %v1354 = vadd.f32 %v1286, %v1297
          %v1355 = vadd.f32 %v1287, %v1297
          %v1356 = vadd.f32 %v1288, %v1297
          %v1357 = vadd.f32 %v1289, %v1297
          %v1358 = vadd.f32 %v1290, %v1297
          %v1359 = vadd.f32 %v1291, %v1297
          %v1360 = vadd.f32 %v1292, %v1297
          %v1361 = vadd.f32 %v1293, %v1297
          %v1362 = vadd.f32 %v1294, %v1297
          %v1363 = vmax.f32 %v1299, 0.0
          %v1364 = vmax.f32 %v1300, 0.0
          %v1365 = vmax.f32 %v1301, 0.0
          %v1366 = vmax.f32 %v1302, 0.0
          %v1367 = vmax.f32 %v1303, 0.0
          %v1368 = vmax.f32 %v1304, 0.0
          %v1369 = vmax.f32 %v1305, 0.0
          %v1370 = vmax.f32 %v1306, 0.0
          %v1371 = vmax.f32 %v1307, 0.0
          %v1372 = vmax.f32 %v1308, 0.0
          %v1373 = vmax.f32 %v1309, 0.0
          %v1374 = vmax.f32 %v1310, 0.0
          %v1375 = vmax.f32 %v1311, 0.0
          %v1376 = vmax.f32 %v1312, 0.0
          %v1377 = vmax.f32 %v1313, 0.0
          %v1378 = vmax.f32 %v1314, 0.0
          %v1379 = vmax.f32 %v1315, 0.0
          %v1380 = vmax.f32 %v1316, 0.0
          %v1381 = vmax.f32 %v1317, 0.0
          %v1382 = vmax.f32 %v1318, 0.0
          %v1383 = vmax.f32 %v1319, 0.0
          %v1384 = vmax.f32 %v1320, 0.0
          %v1385 = vmax.f32 %v1321, 0.0
          %v1386 = vmax.f32 %v1322, 0.0
          %v1387 = vmax.f32 %v1323, 0.0
          %v1388 = vmax.f32 %v1324, 0.0
          %v1389 = vmax.f32 %v1325, 0.0
          %v1390 = vmax.f32 %v1326, 0.0
          %v1391 = vmax.f32 %v1327, 0.0
          %v1392 = vmax.f32 %v1328, 0.0
          %v1393 = vmax.f32 %v1329, 0.0
          %v1394 = vmax.f32 %v1330, 0.0
          %v1395 = vmax.f32 %v1331, 0.0
          %v1396 = vmax.f32 %v1332, 0.0
          %v1397 = vmax.f32 %v1333, 0.0
          %v1398 = vmax.f32 %v1334, 0.0
          %v1399 = vmax.f32 %v1335, 0.0
          %v1400 = vmax.f32 %v1336, 0.0
          %v1401 = vmax.f32 %v1337, 0.0
          %v1402 = vmax.f32 %v1338, 0.0
          %v1403 = vmax.f32 %v1339, 0.0
          %v1404 = vmax.f32 %v1340, 0.0
          %v1405 = vmax.f32 %v1341, 0.0
          %v1406 = vmax.f32 %v1342, 0.0
          %v1407 = vmax.f32 %v1343, 0.0
          %v1408 = vmax.f32 %v1344, 0.0
          %v1409 = vmax.f32 %v1345, 0.0
          %v1410 = vmax.f32 %v1346, 0.0
          %v1411 = vmax.f32 %v1347, 0.0
          %v1412 = vmax.f32 %v1348, 0.0
          %v1413 = vmax.f32 %v1349, 0.0
          %v1414 = vmax.f32 %v1350, 0.0
          %v1415 = vmax.f32 %v1351, 0.0
          %v1416 = vmax.f32 %v1352, 0.0
          %v1417 = vmax.f32 %v1353, 0.0
          %v1418 = vmax.f32 %v1354, 0.0
          %v1419 = vmax.f32 %v1355, 0.0
          %v1420 = vmax.f32 %v1356, 0.0
          %v1421 = vmax.f32 %v1357, 0.0
          %v1422 = vmax.f32 %v1358, 0.0
          %v1423 = vmax.f32 %v1359, 0.0
          %v1424 = vmax.f32 %v1360, 0.0
          %v1425 = vmax.f32 %v1361, 0.0
          %v1426 = vmax.f32 %v1362, 0.0
          %vm1427 = vcmask 523264
          %v1428 = vsel %vm1427, %v1363, 0.0
          %v1429 = vsel %vm1427, %v1364, 0.0
          %v1430 = vadd.f32 %v1428, %v1429
          %v1431 = vsel %vm1427, %v1365, 0.0
          %v1432 = vadd.f32 %v1430, %v1431
          %v1433 = vsel %vm1427, %v1366, 0.0
          %v1434 = vadd.f32 %v1432, %v1433
          %v1435 = vsel %vm1427, %v1367, 0.0
          %v1436 = vadd.f32 %v1434, %v1435
          %v1437 = vsel %vm1427, %v1368, 0.0
          %v1438 = vadd.f32 %v1436, %v1437
          %v1439 = vsel %vm1427, %v1369, 0.0
          %v1440 = vadd.f32 %v1438, %v1439
          %v1441 = vsel %vm1427, %v1370, 0.0
          %v1442 = vadd.f32 %v1440, %v1441
          %v1443 = vsel %vm1427, %v1371, 0.0
          %v1444 = vadd.f32 %v1442, %v1443
          %v1445 = vsel %vm1427, %v1372, 0.0
          %v1446 = vadd.f32 %v1444, %v1445
          %v1447 = vsel %vm1427, %v1373, 0.0
          %v1448 = vadd.f32 %v1446, %v1447
          %v1449 = vsel %vm1427, %v1374, 0.0
          %v1450 = vadd.f32 %v1448, %v1449
          %v1451 = vsel %vm1427, %v1375, 0.0
          %v1452 = vadd.f32 %v1450, %v1451
          %v1453 = vsel %vm1427, %v1376, 0.0
          %v1454 = vadd.f32 %v1452, %v1453
          %v1455 = vsel %vm1427, %v1377, 0.0
          %v1456 = vadd.f32 %v1454, %v1455
          %v1457 = vsel %vm1427, %v1378, 0.0
          %v1458 = vadd.f32 %v1456, %v1457
          %v1459 = vsel %vm1427, %v1379, 0.0
          %v1460 = vadd.f32 %v1458, %v1459
          %v1461 = vsel %vm1427, %v1380, 0.0
          %v1462 = vadd.f32 %v1460, %v1461
          %v1463 = vsel %vm1427, %v1381, 0.0
          %v1464 = vadd.f32 %v1462, %v1463
          %v1465 = vsel %vm1427, %v1382, 0.0
          %v1466 = vadd.f32 %v1464, %v1465
          %v1467 = vsel %vm1427, %v1383, 0.0
          %v1468 = vadd.f32 %v1466, %v1467
          %v1469 = vsel %vm1427, %v1384, 0.0
          %v1470 = vadd.f32 %v1468, %v1469
          %v1471 = vsel %vm1427, %v1385, 0.0
          %v1472 = vadd.f32 %v1470, %v1471
          %v1473 = vsel %vm1427, %v1386, 0.0
          %v1474 = vadd.f32 %v1472, %v1473
          %v1475 = vsel %vm1427, %v1387, 0.0
          %v1476 = vadd.f32 %v1474, %v1475
          %v1477 = vsel %vm1427, %v1388, 0.0
          %v1478 = vadd.f32 %v1476, %v1477
          %v1479 = vsel %vm1427, %v1389, 0.0
          %v1480 = vadd.f32 %v1478, %v1479
          %v1481 = vsel %vm1427, %v1390, 0.0
          %v1482 = vadd.f32 %v1480, %v1481
          %v1483 = vsel %vm1427, %v1391, 0.0
          %v1484 = vadd.f32 %v1482, %v1483
          %v1485 = vsel %vm1427, %v1392, 0.0
          %v1486 = vadd.f32 %v1484, %v1485
          %v1487 = vsel %vm1427, %v1393, 0.0
          %v1488 = vadd.f32 %v1486, %v1487
          %v1489 = vsel %vm1427, %v1394, 0.0
          %v1490 = vadd.f32 %v1488, %v1489
          %v1491 = vrot.slane %v1490, 4
          %v1492 = vadd.f32 %v1490, %v1491
          %v1493 = vrot.slane %v1492, 2
          %v1494 = vadd.f32 %v1492, %v1493
          %v1495 = vrot.slane %v1494, 1
          %v1496 = vadd.f32 %v1494, %v1495
          %v1497 = vsel %vm1427, %v1395, 0.0
          %v1498 = vsel %vm1427, %v1396, 0.0
          %v1499 = vadd.f32 %v1497, %v1498
          %v1500 = vsel %vm1427, %v1397, 0.0
          %v1501 = vadd.f32 %v1499, %v1500
          %v1502 = vsel %vm1427, %v1398, 0.0
          %v1503 = vadd.f32 %v1501, %v1502
          %v1504 = vsel %vm1427, %v1399, 0.0
          %v1505 = vadd.f32 %v1503, %v1504
          %v1506 = vsel %vm1427, %v1400, 0.0
          %v1507 = vadd.f32 %v1505, %v1506
          %v1508 = vsel %vm1427, %v1401, 0.0
          %v1509 = vadd.f32 %v1507, %v1508
          %v1510 = vsel %vm1427, %v1402, 0.0
          %v1511 = vadd.f32 %v1509, %v1510
          %v1512 = vsel %vm1427, %v1403, 0.0
          %v1513 = vadd.f32 %v1511, %v1512
          %v1514 = vsel %vm1427, %v1404, 0.0
          %v1515 = vadd.f32 %v1513, %v1514
          %v1516 = vsel %vm1427, %v1405, 0.0
          %v1517 = vadd.f32 %v1515, %v1516
          %v1518 = vsel %vm1427, %v1406, 0.0
          %v1519 = vadd.f32 %v1517, %v1518
          %v1520 = vsel %vm1427, %v1407, 0.0
          %v1521 = vadd.f32 %v1519, %v1520
          %v1522 = vsel %vm1427, %v1408, 0.0
          %v1523 = vadd.f32 %v1521, %v1522
          %v1524 = vsel %vm1427, %v1409, 0.0
          %v1525 = vadd.f32 %v1523, %v1524
          %v1526 = vsel %vm1427, %v1410, 0.0
          %v1527 = vadd.f32 %v1525, %v1526
          %v1528 = vsel %vm1427, %v1411, 0.0
          %v1529 = vadd.f32 %v1527, %v1528
          %v1530 = vsel %vm1427, %v1412, 0.0
          %v1531 = vadd.f32 %v1529, %v1530
          %v1532 = vsel %vm1427, %v1413, 0.0
          %v1533 = vadd.f32 %v1531, %v1532
          %v1534 = vsel %vm1427, %v1414, 0.0
          %v1535 = vadd.f32 %v1533, %v1534
          %v1536 = vsel %vm1427, %v1415, 0.0
          %v1537 = vadd.f32 %v1535, %v1536
          %v1538 = vsel %vm1427, %v1416, 0.0
          %v1539 = vadd.f32 %v1537, %v1538
          %v1540 = vsel %vm1427, %v1417, 0.0
          %v1541 = vadd.f32 %v1539, %v1540
          %v1542 = vsel %vm1427, %v1418, 0.0
          %v1543 = vadd.f32 %v1541, %v1542
          %v1544 = vsel %vm1427, %v1419, 0.0
          %v1545 = vadd.f32 %v1543, %v1544
          %v1546 = vsel %vm1427, %v1420, 0.0
          %v1547 = vadd.f32 %v1545, %v1546
          %v1548 = vsel %vm1427, %v1421, 0.0
          %v1549 = vadd.f32 %v1547, %v1548
          %v1550 = vsel %vm1427, %v1422, 0.0
          %v1551 = vadd.f32 %v1549, %v1550
          %v1552 = vsel %vm1427, %v1423, 0.0
          %v1553 = vadd.f32 %v1551, %v1552
          %v1554 = vsel %vm1427, %v1424, 0.0
          %v1555 = vadd.f32 %v1553, %v1554
          %v1556 = vsel %vm1427, %v1425, 0.0
          %v1557 = vadd.f32 %v1555, %v1556
          %v1558 = vsel %vm1427, %v1426, 0.0
          %v1559 = vadd.f32 %v1557, %v1558
          %v1560 = vrot.slane %v1559, 4
          %v1561 = vadd.f32 %v1559, %v1560
          %v1562 = vrot.slane %v1561, 2
          %v1563 = vadd.f32 %v1561, %v1562
          %v1564 = vrot.slane %v1563, 1
          %v1565 = vadd.f32 %v1563, %v1564
          %v1566 = vmul.f32 %v1496, 0.00390625
          %v1567 = vmul.f32 %v1565, 0.00390625
          %s1568 = smul.u32 %s26, 2
          %vm1571 = vcmask 1041409
          %v1572 = vsel %vm1571, %v1567, %v1566
          %s1574 = scalar_lea.vmem [#allocation6], %s1568
          %vm1575 = vcmask 517120
          %1576 = vst.msk [vmem:[%s1574] sm:$0x3] %vm1575, %v1572
        $region72: #{tpu_custom_call.1} parent=55 // pred_fallthru
          _
        %p1577 = scmp.eq.s32.totalorder %s26, 1
        %p1578 = pnand %p1190, %p1577
        %p1579 = pneg %p1578
        // Predicated region
        $region73: #{tpu_custom_call.1} parent=55 // pred_check
          _
        $region74: #{tpu_custom_call.1} parent=55 // pred_check_branch
          %1581 = sbr.rel (%p1578) target = $region76
        $region75: #{tpu_custom_call.1} parent=55 // pred_region
          %v1582 = vld [vmem:[#allocation6] sm:$0xf]
          %v1583 = vld [vmem:[%s4] sm:$0xff]
          %v1584 = vld [vmem:[%s4 + $0x8] sm:$0xff]
          %v1585 = vld [vmem:[%s4 + $0x10] sm:$0xff]
          %v1586 = vld [vmem:[%s4 + $0x18] sm:$0xff]
          %v1587 = vld [vmem:[%s4 + $0x20] sm:$0xff]
          %v1588 = vld [vmem:[%s4 + $0x28] sm:$0xff]
          %v1589 = vld [vmem:[%s4 + $0x30] sm:$0xff]
          %v1590 = vld [vmem:[%s4 + $0x38] sm:$0xff]
          %vm1591 = vcmask 523264
          %v1593 = vsel %vm1591, %v1582, 0
          %1595 = vmatpush.msra.mxu0 0.0
          %1596 = vmatpush.msra.mxu0 0.0
          %1597 = vmatpush.msra.mxu0 0.0
          %1598 = vmatpush.msra.mxu0 0.0
          %1599 = vmatpush.msra.mxu0 0.0
          %1600 = vmatpush.msra.mxu0 0.0
          %1601 = vmatpush.msra.mxu0 0.0
          %1602 = vmatpush.msra.mxu0 0.0
          %1603 = vmatpush.msra.mxu0 %v1590
          %1604 = vmatpush.msra.mxu0 %v1589
          %1605 = vmatpush.msra.mxu0 %v1588
          %1606 = vmatpush.msra.mxu0 %v1587
          %1607 = vmatpush.msra.mxu0 %v1586
          %1608 = vmatpush.msra.mxu0 %v1585
          %1609 = vmatpush.msra.mxu0 %v1584
          %1610 = vmatpush.msra.mxu0 %v1583
          %1611 = vmatmul.f32.gmra.mxu0 %v1593
          %v1612 = vpop.f32.mrf.mxu0
          %v1613 = vadd.f32 0.0, %v1612
          %1614 = vdwg.mxu0
          %vm1615 = vcmask 519168
          %v1616 = vsel %vm1615, %v1613, 0.0
          %v1617 = vrot.slane %v1616, 4
          %v1618 = vadd.f32 %v1616, %v1617
          %v1619 = vrot.slane %v1618, 2
          %v1620 = vadd.f32 %v1618, %v1619
          %v1621 = vrot.slane %v1620, 1
          %v1622 = vadd.f32 %v1620, %v1621
          %v1623 = vrcp.pop 4.0
          %v1624 = vmul.f32 4.0, %v1623
          %v1625 = vsub.f32 1.0, %v1624
          %v1626 = vmul.f32 %v1623, %v1625
          %v1627 = vadd.f32 %v1623, %v1626
          %vm1628 = vweird.f32 %v1623
          %v1629 = vsel %vm1628, %v1623, %v1627
          %v1630 = vmul.f32 %v1622, %v1629
          %v1631 = vmul.f32 %v1613, %v1613
          %v1632 = vsel %vm1615, %v1631, 0.0
          %v1633 = vrot.slane %v1632, 4
          %v1634 = vadd.f32 %v1632, %v1633
          %v1635 = vrot.slane %v1634, 2
          %v1636 = vadd.f32 %v1634, %v1635
          %v1637 = vrot.slane %v1636, 1
          %v1638 = vadd.f32 %v1636, %v1637
          %v1639 = vmul.f32 %v1638, %v1629
          %v1640 = vmul.f32 %v1630, %v1630
          %v1641 = vsub.f32 %v1639, %v1640
          %v1642 = vmax.f32 %v1641, 0.0
          %v1643 = vsub.f32 %v1613, %v1630
          %v1644 = vadd.f32 %v1642, 1e-05
          %v1645 = vrsqrt.pop %v1644
          %v1646 = vmul.f32 %v1645, %v1644
          %v1647 = vmul.f32 %v1646, %v1645
          %v1648 = vmul.f32 0.5, %v1647
          %v1649 = vsub.f32 1.5, %v1648
          %v1650 = vmul.f32 %v1645, %v1649
          %vm1651 = vweird.f32 %v1644
          %vm1652 = vweird.f32 %v1645
          %vm1653 = vmor %vm1651, %vm1652
          %v1654 = vsel %vm1653, %v1645, %v1650
          %v1655 = vmul.f32 %v1643, %v1654
          %v1656 = vld [vmem:[%s5] sm:$0x1]
          %v1658 = vperm.slane %v1656, 0
          %v1660 = vmul.f32 %v1655, %v1658
          %v1661 = vld [vmem:[%s6] sm:$0x1]
          %v1663 = vperm.slane %v1661, 0
          %v1665 = vadd.f32 %v1660, %v1663
          %v1666 = vmax.f32 %v1665, 0.0
          %v1667 = vld [vmem:[%s7] sm:$0xff]
          %v1668 = vld [vmem:[%s7 + $0x8] sm:$0xff]
          %v1669 = vld [vmem:[%s7 + $0x10] sm:$0xff]
          %v1670 = vld [vmem:[%s7 + $0x18] sm:$0xff]
          %v1671 = vld [vmem:[%s7 + $0x20] sm:$0xff]
          %v1672 = vld [vmem:[%s7 + $0x28] sm:$0xff]
          %v1673 = vld [vmem:[%s7 + $0x30] sm:$0xff]
          %v1674 = vld [vmem:[%s7 + $0x38] sm:$0xff]
          %v1675 = vld [vmem:[%s8] sm:$0x1]
          %v1677 = vperm.slane %v1675, 0
          %v1680 = vsel %vm1591, %v1666, 0
          %1682 = vmatpush.msra.mxu0 0.0
          %1683 = vmatpush.msra.mxu0 0.0
          %1684 = vmatpush.msra.mxu0 0.0
          %1685 = vmatpush.msra.mxu0 0.0
          %1686 = vmatpush.msra.mxu0 0.0
          %1687 = vmatpush.msra.mxu0 0.0
          %1688 = vmatpush.msra.mxu0 0.0
          %1689 = vmatpush.msra.mxu0 0.0
          %1690 = vmatpush.msra.mxu0 %v1674
          %1691 = vmatpush.msra.mxu0 %v1673
          %1692 = vmatpush.msra.mxu0 %v1672
          %1693 = vmatpush.msra.mxu0 %v1671
          %1694 = vmatpush.msra.mxu0 %v1670
          %1695 = vmatpush.msra.mxu0 %v1669
          %1696 = vmatpush.msra.mxu0 %v1668
          %1697 = vmatpush.msra.mxu0 %v1667
          %1698 = vmatmul.f32.gmra.mxu0 %v1680
          %v1699 = vpop.f32.mrf.mxu0
          %v1700 = vadd.f32 %v1677, %v1699
          %1701 = vdwg.mxu0
          %v1702 = vmul.f32 %v1700, %v1700
          %vm1703 = vcmask 1043456
          %v1704 = vsel %vm1703, %v1702, 0.0
          %1705 = vadd.xlane.f32.xlu0 %v1704
          %v1706 = vpop.xlane.xlu0 %1705
          %v1707 = vmax.f32 %v1706, 1e-24
          %v1708 = vrsqrt.pop %v1707
          %v1709 = vmul.f32 %v1708, %v1707
          %v1710 = vmul.f32 %v1709, %v1708
          %v1711 = vmul.f32 0.5, %v1710
          %v1712 = vsub.f32 1.5, %v1711
          %v1713 = vmul.f32 %v1708, %v1712
          %vm1714 = vweird.f32 %v1707
          %vm1715 = vweird.f32 %v1708
          %vm1716 = vmor %vm1714, %vm1715
          %v1717 = vsel %vm1716, %v1708, %v1713
          %v1718 = vmul.f32 %v1700, %v1717
          %1719 = vst [vmem:[#allocation7] sm:$0xf] %v1718
        $region76: #{tpu_custom_call.1} parent=55 // pred_fallthru
          _
        // Predicated region
        $region77: #{tpu_custom_call.1} parent=55 // pred_check
          %p1720 = pneg %p240
        $region78: #{tpu_custom_call.1} parent=55 // pred_check_branch
          %1722 = sbr.rel (%p1720) target = $region80
        $region79: #{tpu_custom_call.1} parent=55 // pred_region
          %1724 = vsyncadd [#allocation8], 0
          %s1726 = sshll.u32 [#allocation7], 4
          %s1727 = int_to_ptr.vmem [resolvable:$true] %s1726
          %s1728 = sshll.u32 %s9, 4
          %s1729 = int_to_ptr.hbm [resolvable:$true] %s1728
          %1731 = dma.vmem_to_hbm [thread:$0]  %s1727, 64, %s1729, [#allocation8]
        $region80: #{tpu_custom_call.1} parent=55 // pred_fallthru
          _
        // Predicated region
        $region81: #{tpu_custom_call.1} parent=55 // pred_check
          %p1732 = pneg %p240
        $region82: #{tpu_custom_call.1} parent=55 // pred_check_branch
          %1734 = sbr.rel (%p1732) target = $region84
        $region83: #{tpu_custom_call.1} parent=55 // pred_region
          %1736 = dma.done [#allocation8], 64
        $region84: #{tpu_custom_call.1} parent=55 // pred_fallthru
          _
      $region56: #{tpu_custom_call.1} parent=5 // pred_fallthru
        _
      %p1737 = scmp.le.s32.totalorder 2, %s16
      // Predicated region
      $region85: #{tpu_custom_call.1} parent=5 // pred_check
        %p1738 = pneg %p1737
      $region86: #{tpu_custom_call.1} parent=5 // pred_check_branch
        %1740 = sbr.rel (%p1738) target = $region88
      $region87: #{tpu_custom_call.1} parent=5 // pred_region
        %s1741 = ssub.s32 %s16, 2
      $region88: #{tpu_custom_call.1} parent=5 // pred_fallthru
        _
    $region6: #{tpu_custom_call.1} parent=1 // loop_footer
      %s20 = sadd.s32 1, %s16
    $region7: #{tpu_custom_call.1} parent=1 // loop_footer_branch
      %15 = sbr.rel target = $region3
    $region8: #{tpu_custom_call.1} parent=1 // loop_exit
      _
    %1742 = vsyncpa [#allocation8], 1
    %s1743 = scalar_lea.sflag [#allocation8], 1
    %1744 = vsyncpa %s1743, 1

</llo_original>
